<compile_context>
chip_gen: v5e
topology: v5e:2x2
jax: 0.10.0
libtpu: 0.0.40
codegen_flags: <defaults>
</compile_context>

<pallas_src>
import functools
from typing import NamedTuple, Optional

import jax
import jax.numpy as jnp
from jax import lax
from jax.experimental import pallas as pl
from jax.experimental.pallas import tpu as pltpu

LN_EPS = 1e-5  # torch.nn.LayerNorm default


def _round_up(n, m):
    return (n + m - 1) // m * m


def _has_buffered_blockspec():
    try:
        pl.BlockSpec((8, 128), lambda i: (0, 0), pipeline_mode=pl.Buffered(1))
        return True
    except Exception:
        return False


_HAS_BUFFERED = _has_buffered_blockspec()


def _vmem_budget_bytes():
    """Physical per-core VMEM minus headroom for compiler-internal scratch."""
    try:
        cap = int(pltpu.get_tpu_info().vmem_capacity_bytes)
    except Exception:
        cap = 128 << 20  # v5e/v6e; v7x reports 64 MiB when get_tpu_info works
    return max(cap - (16 << 20), 16 << 20)


def _choose_tk4(h4p, tk4=None):
    if tk4 is not None:
        assert tk4 % 128 == 0 and h4p % tk4 == 0
        return tk4
    for cand in (2048, 1024, 512, 256, 128):
        if h4p % cand == 0:
            return cand
    return 128


class ResidualBlockParams(NamedTuple):
    """Pre-padded, pre-cast parameters. Build ONCE (init time), reuse every call."""
    h: int            # true hidden dim
    h4: int           # true 4*hidden dim
    gamma: jax.Array  # (1, Hp)   f32
    beta: jax.Array   # (1, Hp)   f32
    w1: jax.Array     # (Hp, H4p) bf16  (stored (in, out), i.e. torch fc1.weight.T)
    b1: jax.Array     # (1, H4p)  f32
    w2: jax.Array     # (H4p, Hp) bf16  (torch fc2.weight.T)
    b2: jax.Array     # (1, Hp)   f32


def prepare_params(gamma, beta, w1, b1, w2, b2):
    """One-time cast + lane-pad of the parameters (hoisted out of the hot path)."""
    h, h4 = w1.shape
    assert w2.shape == (h4, h)
    hp, h4p = _round_up(h, 128), _round_up(h4, 128)
    f32, bf16 = jnp.float32, jnp.bfloat16

    gamma_p = jnp.pad(gamma.astype(f32).reshape(1, h), ((0, 0), (0, hp - h)))
    beta_p = jnp.pad(beta.astype(f32).reshape(1, h), ((0, 0), (0, hp - h)))
    w1_p = jnp.pad(w1.astype(bf16), ((0, hp - h), (0, h4p - h4)))
    b1_p = jnp.pad(b1.astype(f32).reshape(1, h4), ((0, 0), (0, h4p - h4)))
    w2_p = jnp.pad(w2.astype(bf16), ((0, h4p - h4), (0, hp - h)))
    b2_p = jnp.pad(b2.astype(f32).reshape(1, h), ((0, 0), (0, hp - h)))
    return ResidualBlockParams(h, h4, gamma_p, beta_p, w1_p, b1_p, w2_p, b2_p)


# ----------------------------- kernels --------------------------------------


def _rb_layernorm(x, gamma, beta, h_true):
    """LayerNorm over the true (unpadded) features; padded x columns must be zero."""
    hp = x.shape[-1]
    inv_h = 1.0 / h_true
    mean = jnp.sum(x, axis=-1, keepdims=True) * inv_h
    centered = x - mean
    if hp != h_true:
        col = lax.broadcasted_iota(jnp.int32, (1, hp), 1)
        centered = jnp.where(col < h_true, centered, 0.0)
    var = jnp.sum(centered * centered, axis=-1, keepdims=True) * inv_h
    xn = centered * lax.rsqrt(var + LN_EPS)
    return xn * gamma + beta


def _rb_kernel_resident(h_true, x_ref, gamma_ref, beta_ref,
                        w1_ref, b1_ref, w2_ref, b2_ref, o_ref):
    """Weights fully resident in VMEM; one grid axis over batch tiles."""
    x = x_ref[...]
    xn = _rb_layernorm(x, gamma_ref[...], beta_ref[...], h_true).astype(jnp.bfloat16)
    h = jnp.dot(xn, w1_ref[...], preferred_element_type=jnp.float32)
    # fused bias + ReLU + bf16 downcast: only the bf16 copy of the (TB, 4H)
    # intermediate is materialized for the second matmul.
    h = jnp.maximum(h + b1_ref[...], 0.0).astype(jnp.bfloat16)
    y = jnp.dot(h, w2_ref[...], preferred_element_type=jnp.float32)
    o_ref[...] = x + y + b2_ref[...]


def _rb_kernel_stream4h(h_true, x_ref, gamma_ref, beta_ref,
                        w1_ref, b1_ref, w2_ref, b2_ref, o_ref,
                        xn_ref, acc_ref):
    """Large-H path: stream the 4H axis (grid axis 1, 'arbitrary') and accumulate."""
    k = pl.program_id(1)

    @pl.when(k == 0)
    def _():
        xn_ref[...] = _rb_layernorm(x_ref[...], gamma_ref[...], beta_ref[...], h_true)
        acc_ref[...] = jnp.zeros_like(acc_ref)

    h = jnp.dot(xn_ref[...].astype(jnp.bfloat16), w1_ref[...],
                preferred_element_type=jnp.float32)
    h = jnp.maximum(h + b1_ref[...], 0.0).astype(jnp.bfloat16)
    acc_ref[...] += jnp.dot(h, w2_ref[...], preferred_element_type=jnp.float32)

    @pl.when(k == pl.num_programs(1) - 1)
    def _():
        o_ref[...] = x_ref[...] + acc_ref[...] + b2_ref[...]


# ----------------------------- wrapper ---------------------------------------


def residual_block(x, params: ResidualBlockParams, *, tile_b=256,
                   force_stream: Optional[bool] = None, tk4: Optional[int] = None):
    """Fused SimBa ResidualBlock forward.

    x: (B, H) float32.  params: from prepare_params().
    tile_b: batch tile in rows (256 matches v6e/v7x MXU M; consider 128 on v5e).
    force_stream: None = auto (stream the 4H axis when bf16 weights would not fit
    resident in VMEM); True/False overrides.  tk4: 4H chunk size for the stream path.
    """
    f32 = jnp.float32
    B, Hx = x.shape
    H, H4 = params.h, params.h4
    assert Hx == H, f"x feature dim {Hx} != param hidden dim {H}"
    Hp, H4p = params.w1.shape
    assert params.w2.shape == (H4p, Hp)

    # --- batch tiling: multiple of 8 sublanes; force >=2 grid steps whenever B > 8
    #     so v7x's second TensorCore gets work and DMA overlaps compute.
    tile_b = min(tile_b, _round_up(B, 8))
    if B > 8 and pl.cdiv(B, tile_b) == 1:
        tile_b = _round_up(pl.cdiv(B, 2), 8)
    num_tiles = pl.cdiv(B, tile_b)
    tile_b = _round_up(pl.cdiv(B, num_tiles), 8)
    Bp = num_tiles * tile_b

    # --- aligned fast path: skip activation pad / output slice (each is an HBM pass).
    xp = x if x.dtype == f32 else x.astype(f32)
    needs_pad = (Bp != B) or (Hp != H)
    if needs_pad:
        xp = jnp.pad(xp, ((0, Bp - B), (0, Hp - H)))

    budget = _vmem_budget_bytes()
    weight_factor = 1 if _HAS_BUFFERED else 2
    resident_weight_bytes = weight_factor * 2 * (Hp * H4p + H4p * Hp)   # bf16
    resident_act_bytes = (4 * tile_b * Hp * 4        # x/out tiles, double-buffered
                          + tile_b * Hp * 6          # xn f32 + bf16 temporaries
                          + tile_b * H4p * 6)        # fc1 intermediate f32 + bf16
    resident_total = resident_weight_bytes + resident_act_bytes + (4 << 20)
    use_stream = (resident_total > budget) if force_stream is None else force_stream

    cost = pl.CostEstimate(
        flops=2 * 2 * Bp * Hp * H4p,                       # two matmuls
        transcendentals=Bp,                                # one rsqrt per row
        bytes_accessed=2 * Bp * Hp * 4 + (Hp * H4p + H4p * Hp) * 2,
    )

    kernel_args = (xp, params.gamma, params.beta,
                   params.w1, params.b1, params.w2, params.b2)
    out_shape = jax.ShapeDtypeStruct((Bp, Hp), f32)

    if not use_stream:
        # ----------------- resident-weight variant -----------------
        def run_resident(single_buffer_weights):
            if single_buffer_weights:
                def w_spec(shape):
                    return pl.BlockSpec(shape, lambda i: (0, 0),
                                        pipeline_mode=pl.Buffered(1))
                wf = 1
            else:
                def w_spec(shape):
                    return pl.BlockSpec(shape, lambda i: (0, 0))
                wf = 2
            vmem_limit = int(min(max(wf * 2 * (Hp * H4p + H4p * Hp)
                                     + resident_act_bytes + (4 << 20), 16 << 20),
                                 budget))
            return pl.pallas_call(
                functools.partial(_rb_kernel_resident, H),
                out_shape=out_shape,
                grid_spec=pltpu.PrefetchScalarGridSpec(
                    num_scalar_prefetch=0,
                    grid=(num_tiles,),
                    in_specs=[
                        pl.BlockSpec((tile_b, Hp), lambda i: (i, 0)),   # x tile
                        pl.BlockSpec((1, Hp),      lambda i: (0, 0)),   # gamma
                        pl.BlockSpec((1, Hp),      lambda i: (0, 0)),   # beta
                        w_spec((Hp, H4p)),                              # w1 (resident)
                        pl.BlockSpec((1, H4p),     lambda i: (0, 0)),   # b1
                        w_spec((H4p, Hp)),                              # w2 (resident)
                        pl.BlockSpec((1, Hp),      lambda i: (0, 0)),   # b2
                    ],
                    out_specs=pl.BlockSpec((tile_b, Hp), lambda i: (i, 0)),
                ),
                compiler_params=pltpu.CompilerParams(
                    dimension_semantics=("parallel",),
                    vmem_limit_bytes=vmem_limit,
                ),
                cost_estimate=cost,
            )(*kernel_args)

        if _HAS_BUFFERED:
            try:
                out = run_resident(True)
            except Exception:
                out = run_resident(False)   # fallback if Buffered(1) is rejected
        else:
            out = run_resident(False)
    else:
        # ----------------- 4H-streaming variant (large H) -----------------
        tk4 = _choose_tk4(H4p, tk4)
        num_k = H4p // tk4
        stream_bytes = (2 * 2 * (Hp * tk4 + tk4 * Hp)   # w1/w2 chunks, double-buffered
                        + 4 * tile_b * Hp * 4           # x/out tiles, double-buffered
                        + tile_b * Hp * 8               # xn f32 + acc f32 scratch
                        + tile_b * tk4 * 6              # fc1 chunk f32 + bf16
                        + (4 << 20))
        vmem_limit = int(min(max(stream_bytes, 16 << 20), budget))
        out = pl.pallas_call(
            functools.partial(_rb_kernel_stream4h, H),
            out_shape=out_shape,
            grid_spec=pltpu.PrefetchScalarGridSpec(
                num_scalar_prefetch=0,
                grid=(num_tiles, num_k),
                in_specs=[
                    pl.BlockSpec((tile_b, Hp), lambda i, k: (i, 0)),   # x tile
                    pl.BlockSpec((1, Hp),      lambda i, k: (0, 0)),   # gamma
                    pl.BlockSpec((1, Hp),      lambda i, k: (0, 0)),   # beta
                    pl.BlockSpec((Hp, tk4),    lambda i, k: (0, k)),   # w1 chunk
                    pl.BlockSpec((1, tk4),     lambda i, k: (0, k)),   # b1 chunk
                    pl.BlockSpec((tk4, Hp),    lambda i, k: (k, 0)),   # w2 chunk
                    pl.BlockSpec((1, Hp),      lambda i, k: (0, 0)),   # b2
                ],
                out_specs=pl.BlockSpec((tile_b, Hp), lambda i, k: (i, 0)),
                scratch_shapes=[
                    pltpu.VMEM((tile_b, Hp), jnp.float32),   # LayerNorm output
                    pltpu.VMEM((tile_b, Hp), jnp.float32),   # fc2 accumulator
                ],
            ),
            compiler_params=pltpu.CompilerParams(
                dimension_semantics=("parallel", "arbitrary"),
                vmem_limit_bytes=vmem_limit,
            ),
            cost_estimate=cost,
        )(*kernel_args)

    if needs_pad:
        out = out[:B, :H]
    return out


# ----------------------- init / reference / demo -----------------------------


def init_params(key, hidden_dim, dtype=jnp.float32):
    """Synthetic init matching the PyTorch module (weights stored as (in, out))."""
    h, h4 = hidden_dim, hidden_dim * 4
    k1, k2, k3, k4 = jax.random.split(key, 4)

    gamma = jnp.ones((1, h), dtype)
    beta = jnp.zeros((1, h), dtype)

    std1 = (2.0 / h) ** 0.5                       # kaiming_normal_, fan_in, relu
    w1 = jax.random.normal(k1, (h, h4), dtype) * std1
    b1 = jax.random.uniform(k2, (1, h4), dtype,
                            minval=-1.0 / h ** 0.5, maxval=1.0 / h ** 0.5)

    std2 = (2.0 / h4) ** 0.5
    w2 = jax.random.normal(k3, (h4, h), dtype) * std2
    b2 = jax.random.uniform(k4, (1, h), dtype,
                            minval=-1.0 / h4 ** 0.5, maxval=1.0 / h4 ** 0.5)

    return gamma, beta, w1, b1, w2, b2


def residual_block_ref(x, gamma, beta, w1, b1, w2, b2):
    """Pure-JAX f32 reference of the PyTorch forward."""
    mean = jnp.mean(x, axis=-1, keepdims=True)
    var = jnp.mean((x - mean) ** 2, axis=-1, keepdims=True)
    xn = (x - mean) / jnp.sqrt(var + LN_EPS) * gamma + beta
    h = jnp.maximum(xn @ w1 + b1, 0.0)
    return x + (h @ w2 + b2)


if __name__ == "__main__":
    key = jax.random.PRNGKey(0)
    kx, kp, kx2, kp2 = jax.random.split(key, 4)

    # --- resident-weight path (the common SimBa-scale case) ---
    batch, hidden = 16, 32
    x = jax.random.normal(kx, (batch, hidden), jnp.float32)
    raw = init_params(kp, hidden)
    params = prepare_params(*raw)   # one-time cast/pad, hoisted off the hot path

    out = jax.block_until_ready(residual_block(x, params))
    ref = residual_block_ref(x, *raw)
    assert out.shape == (batch, hidden)
    # bf16 MXU operands (f32 accumulation) -> slightly looser tolerance vs f32 ref.
    assert jnp.allclose(out, ref, atol=5e-2, rtol=5e-2), "resident path mismatch"

    # --- 4H-streaming fallback path (used automatically for large H) ---
    batch2, hidden2 = 12, 64
    x2 = jax.random.normal(kx2, (batch2, hidden2), jnp.float32)
    raw2 = init_params(kp2, hidden2)
    params2 = prepare_params(*raw2)
    out2 = jax.block_until_ready(
        residual_block(x2, params2, force_stream=True, tk4=128))
    ref2 = residual_block_ref(x2, *raw2)
    assert out2.shape == (batch2, hidden2)
    assert jnp.allclose(out2, ref2, atol=5e-2, rtol=5e-2), "streaming path mismatch"

    print("KERNEL_OK")
</pallas_src>

<mosaic_0001>
module attributes {stable_mosaic.version = 11 : i64} {
  func.func @_rb_kernel_resident(%arg0: i32, %arg1: memref<8x128xf32, #tpu.memory_space<vmem>>, %arg2: memref<1x128xf32, #tpu.memory_space<vmem>>, %arg3: memref<1x128xf32, #tpu.memory_space<vmem>>, %arg4: memref<128x128xbf16, #tpu.memory_space<vmem>>, %arg5: memref<1x128xf32, #tpu.memory_space<vmem>>, %arg6: memref<128x128xbf16, #tpu.memory_space<vmem>>, %arg7: memref<1x128xf32, #tpu.memory_space<vmem>>, %arg8: memref<8x128xf32, #tpu.memory_space<vmem>>) attributes {dimension_semantics = [#tpu.dimension_semantics<parallel>], iteration_bounds = array<i64: 2>, scalar_prefetch = 0 : i64, scratch_operands = 0 : i64, tpu.core_type = #tpu.core_type<tc>, window_params = [{transform_indices = @transform_0, window_bounds = array<i64: 8, 128>}, {pipeline_mode = #tpu.pipeline_mode<synchronous>, transform_indices = @transform_1, window_bounds = array<i64: 1, 128>}, {pipeline_mode = #tpu.pipeline_mode<synchronous>, transform_indices = @transform_2, window_bounds = array<i64: 1, 128>}, {pipeline_mode = #tpu.pipeline_mode<synchronous>, transform_indices = @transform_3, window_bounds = array<i64: 128, 128>}, {pipeline_mode = #tpu.pipeline_mode<synchronous>, transform_indices = @transform_4, window_bounds = array<i64: 1, 128>}, {pipeline_mode = #tpu.pipeline_mode<synchronous>, transform_indices = @transform_5, window_bounds = array<i64: 128, 128>}, {pipeline_mode = #tpu.pipeline_mode<synchronous>, transform_indices = @transform_6, window_bounds = array<i64: 1, 128>}, {transform_indices = @transform_7, window_bounds = array<i64: 8, 128>}]} {
    %c0 = arith.constant 0 : index
    %c0_0 = arith.constant 0 : index
    %0 = vector.load %arg1[%c0, %c0_0] : memref<8x128xf32, #tpu.memory_space<vmem>>, vector<8x128xf32>
    %c0_1 = arith.constant 0 : index
    %c0_2 = arith.constant 0 : index
    %1 = vector.load %arg2[%c0_1, %c0_2] : memref<1x128xf32, #tpu.memory_space<vmem>>, vector<1x128xf32>
    %c0_3 = arith.constant 0 : index
    %c0_4 = arith.constant 0 : index
    %2 = vector.load %arg3[%c0_3, %c0_4] : memref<1x128xf32, #tpu.memory_space<vmem>>, vector<1x128xf32>
    %cst = arith.constant dense<0.000000e+00> : vector<8xf32>
    %3 = vector.multi_reduction <add>, %0, %cst [1] : vector<8x128xf32> to vector<8xf32>
    %4 = vector.shape_cast %3 : vector<8xf32> to vector<8x1xf32>
    %cst_5 = arith.constant 3.125000e-02 : f32
    %5 = vector.broadcast %cst_5 : f32 to vector<8x1xf32>
    %6 = arith.mulf %4, %5 : vector<8x1xf32>
    %7 = vector.broadcast %6 : vector<8x1xf32> to vector<8x128xf32>
    %8 = arith.subf %0, %7 : vector<8x128xf32>
    %9 = tpu.iota {dimensions = array<i32: 1>} : vector<1x128xi32>
    %c32_i32 = arith.constant 32 : i32
    %10 = vector.broadcast %c32_i32 : i32 to vector<1x128xi32>
    %11 = arith.cmpi slt, %9, %10 : vector<1x128xi32>
    %cst_6 = arith.constant 0.000000e+00 : f32
    %12 = vector.shape_cast %11 : vector<1x128xi1> to vector<1x128xi1>
    %13 = vector.broadcast %12 : vector<1x128xi1> to vector<8x128xi1>
    %14 = vector.broadcast %cst_6 : f32 to vector<8x128xf32>
    %15 = arith.select %13, %8, %14 : vector<8x128xi1>, vector<8x128xf32>
    %16 = arith.mulf %15, %15 : vector<8x128xf32>
    %cst_7 = arith.constant dense<0.000000e+00> : vector<8xf32>
    %17 = vector.multi_reduction <add>, %16, %cst_7 [1] : vector<8x128xf32> to vector<8xf32>
    %18 = vector.shape_cast %17 : vector<8xf32> to vector<8x1xf32>
    %cst_8 = arith.constant 3.125000e-02 : f32
    %19 = vector.broadcast %cst_8 : f32 to vector<8x1xf32>
    %20 = arith.mulf %18, %19 : vector<8x1xf32>
    %cst_9 = arith.constant 9.99999974E-6 : f32
    %21 = vector.broadcast %cst_9 : f32 to vector<8x1xf32>
    %22 = arith.addf %20, %21 : vector<8x1xf32>
    %23 = math.rsqrt %22 : vector<8x1xf32>
    %24 = vector.broadcast %23 : vector<8x1xf32> to vector<8x128xf32>
    %25 = arith.mulf %15, %24 : vector<8x128xf32>
    %26 = vector.broadcast %1 : vector<1x128xf32> to vector<8x128xf32>
    %27 = arith.mulf %25, %26 : vector<8x128xf32>
    %28 = vector.broadcast %2 : vector<1x128xf32> to vector<8x128xf32>
    %29 = arith.addf %27, %28 : vector<8x128xf32>
    %30 = arith.truncf %29 : vector<8x128xf32> to vector<8x128xbf16>
    %c0_10 = arith.constant 0 : index
    %c0_11 = arith.constant 0 : index
    %31 = vector.load %arg4[%c0_10, %c0_11] : memref<128x128xbf16, #tpu.memory_space<vmem>>, vector<128x128xbf16>
    %cst_12 = arith.constant dense<0.000000e+00> : vector<8x128xf32>
    %32 = tpu.matmul %30, %31, %cst_12 {dimension_numbers = #tpu.dot_dimension_numbers<[1], [0], [0], [1], [0, 0, 1, 1], [], []>} : vector<8x128xbf16>, vector<128x128xbf16>, vector<8x128xf32> -> vector<8x128xf32>
    %c0_13 = arith.constant 0 : index
    %c0_14 = arith.constant 0 : index
    %33 = vector.load %arg5[%c0_13, %c0_14] : memref<1x128xf32, #tpu.memory_space<vmem>>, vector<1x128xf32>
    %34 = vector.broadcast %33 : vector<1x128xf32> to vector<8x128xf32>
    %35 = arith.addf %32, %34 : vector<8x128xf32>
    %cst_15 = arith.constant 0.000000e+00 : f32
    %36 = vector.broadcast %cst_15 : f32 to vector<8x128xf32>
    %37 = arith.maximumf %35, %36 : vector<8x128xf32>
    %38 = arith.truncf %37 : vector<8x128xf32> to vector<8x128xbf16>
    %c0_16 = arith.constant 0 : index
    %c0_17 = arith.constant 0 : index
    %39 = vector.load %arg6[%c0_16, %c0_17] : memref<128x128xbf16, #tpu.memory_space<vmem>>, vector<128x128xbf16>
    %cst_18 = arith.constant dense<0.000000e+00> : vector<8x128xf32>
    %40 = tpu.matmul %38, %39, %cst_18 {dimension_numbers = #tpu.dot_dimension_numbers<[1], [0], [0], [1], [0, 0, 1, 1], [], []>} : vector<8x128xbf16>, vector<128x128xbf16>, vector<8x128xf32> -> vector<8x128xf32>
    %41 = arith.addf %0, %40 : vector<8x128xf32>
    %c0_19 = arith.constant 0 : index
    %c0_20 = arith.constant 0 : index
    %42 = vector.load %arg7[%c0_19, %c0_20] : memref<1x128xf32, #tpu.memory_space<vmem>>, vector<1x128xf32>
    %43 = vector.broadcast %42 : vector<1x128xf32> to vector<8x128xf32>
    %44 = arith.addf %41, %43 : vector<8x128xf32>
    %c0_21 = arith.constant 0 : index
    %c0_22 = arith.constant 0 : index
    %45 = vector.load %arg8[%c0_21, %c0_22] : memref<8x128xf32, #tpu.memory_space<vmem>>, vector<8x128xf32>
    tpu.vector_store %arg8[%c0_21, %c0_22], %44 {strides = array<i32>} : memref<8x128xf32, #tpu.memory_space<vmem>>, vector<8x128xf32>,
    return
  }
  func.func @transform_0(%arg0: i32) -> (i32, i32) {
    %c0_i32 = arith.constant 0 : i32
    %c0_i32_0 = arith.constant 0 : i32
    return %arg0, %c0_i32 : i32, i32
  }
  func.func @transform_1(%arg0: i32) -> (i32, i32) {
    %c0_i32 = arith.constant 0 : i32
    %c0_i32_0 = arith.constant 0 : i32
    %c0_i32_1 = arith.constant 0 : i32
    return %c0_i32, %c0_i32_0 : i32, i32
  }
  func.func @transform_2(%arg0: i32) -> (i32, i32) {
    %c0_i32 = arith.constant 0 : i32
    %c0_i32_0 = arith.constant 0 : i32
    %c0_i32_1 = arith.constant 0 : i32
    return %c0_i32, %c0_i32_0 : i32, i32
  }
  func.func @transform_3(%arg0: i32) -> (i32, i32) {
    %c0_i32 = arith.constant 0 : i32
    %c0_i32_0 = arith.constant 0 : i32
    %c0_i32_1 = arith.constant 0 : i32
    return %c0_i32, %c0_i32_0 : i32, i32
  }
  func.func @transform_4(%arg0: i32) -> (i32, i32) {
    %c0_i32 = arith.constant 0 : i32
    %c0_i32_0 = arith.constant 0 : i32
    %c0_i32_1 = arith.constant 0 : i32
    return %c0_i32, %c0_i32_0 : i32, i32
  }
  func.func @transform_5(%arg0: i32) -> (i32, i32) {
    %c0_i32 = arith.constant 0 : i32
    %c0_i32_0 = arith.constant 0 : i32
    %c0_i32_1 = arith.constant 0 : i32
    return %c0_i32, %c0_i32_0 : i32, i32
  }
  func.func @transform_6(%arg0: i32) -> (i32, i32) {
    %c0_i32 = arith.constant 0 : i32
    %c0_i32_0 = arith.constant 0 : i32
    %c0_i32_1 = arith.constant 0 : i32
    return %c0_i32, %c0_i32_0 : i32, i32
  }
  func.func @transform_7(%arg0: i32) -> (i32, i32) {
    %c0_i32 = arith.constant 0 : i32
    %c0_i32_0 = arith.constant 0 : i32
    return %arg0, %c0_i32 : i32, i32
  }
}

module attributes {stable_mosaic.version = 11 : i64} {
  func.func @_rb_kernel_resident(%arg0: i32, %arg1: memref<8x128xf32, #tpu.memory_space<vmem>>, %arg2: memref<1x128xf32, #tpu.memory_space<vmem>>, %arg3: memref<1x128xf32, #tpu.memory_space<vmem>>, %arg4: memref<128x128xbf16, #tpu.memory_space<vmem>>, %arg5: memref<1x128xf32, #tpu.memory_space<vmem>>, %arg6: memref<128x128xbf16, #tpu.memory_space<vmem>>, %arg7: memref<1x128xf32, #tpu.memory_space<vmem>>, %arg8: memref<8x128xf32, #tpu.memory_space<vmem>>) attributes {dimension_semantics = [#tpu.dimension_semantics<parallel>], iteration_bounds = array<i64: 2>, scalar_prefetch = 0 : i64, scratch_operands = 0 : i64, tpu.core_type = #tpu.core_type<tc>, window_params = [{transform_indices = @transform_0, window_bounds = array<i64: 8, 128>}, {pipeline_mode = #tpu.pipeline_mode<synchronous>, transform_indices = @transform_1, window_bounds = array<i64: 1, 128>}, {pipeline_mode = #tpu.pipeline_mode<synchronous>, transform_indices = @transform_2, window_bounds = array<i64: 1, 128>}, {pipeline_mode = #tpu.pipeline_mode<synchronous>, transform_indices = @transform_3, window_bounds = array<i64: 128, 128>}, {pipeline_mode = #tpu.pipeline_mode<synchronous>, transform_indices = @transform_4, window_bounds = array<i64: 1, 128>}, {pipeline_mode = #tpu.pipeline_mode<synchronous>, transform_indices = @transform_5, window_bounds = array<i64: 128, 128>}, {pipeline_mode = #tpu.pipeline_mode<synchronous>, transform_indices = @transform_6, window_bounds = array<i64: 1, 128>}, {transform_indices = @transform_7, window_bounds = array<i64: 8, 128>}]} {
    %c0 = arith.constant 0 : index
    %c0_0 = arith.constant 0 : index
    %0 = vector.load %arg1[%c0, %c0_0] : memref<8x128xf32, #tpu.memory_space<vmem>>, vector<8x128xf32>
    %c0_1 = arith.constant 0 : index
    %c0_2 = arith.constant 0 : index
    %1 = vector.load %arg2[%c0_1, %c0_2] : memref<1x128xf32, #tpu.memory_space<vmem>>, vector<1x128xf32>
    %c0_3 = arith.constant 0 : index
    %c0_4 = arith.constant 0 : index
    %2 = vector.load %arg3[%c0_3, %c0_4] : memref<1x128xf32, #tpu.memory_space<vmem>>, vector<1x128xf32>
    %cst = arith.constant dense<0.000000e+00> : vector<8xf32>
    %3 = vector.multi_reduction <add>, %0, %cst [1] : vector<8x128xf32> to vector<8xf32>
    %4 = vector.shape_cast %3 : vector<8xf32> to vector<8x1xf32>
    %cst_5 = arith.constant 3.125000e-02 : f32
    %5 = vector.broadcast %cst_5 : f32 to vector<8x1xf32>
    %6 = arith.mulf %4, %5 : vector<8x1xf32>
    %7 = vector.broadcast %6 : vector<8x1xf32> to vector<8x128xf32>
    %8 = arith.subf %0, %7 : vector<8x128xf32>
    %9 = tpu.iota {dimensions = array<i32: 1>} : vector<1x128xi32>
    %c32_i32 = arith.constant 32 : i32
    %10 = vector.broadcast %c32_i32 : i32 to vector<1x128xi32>
    %11 = arith.cmpi slt, %9, %10 : vector<1x128xi32>
    %cst_6 = arith.constant 0.000000e+00 : f32
    %12 = vector.shape_cast %11 : vector<1x128xi1> to vector<1x128xi1>
    %13 = vector.broadcast %12 : vector<1x128xi1> to vector<8x128xi1>
    %14 = vector.broadcast %cst_6 : f32 to vector<8x128xf32>
    %15 = arith.select %13, %8, %14 : vector<8x128xi1>, vector<8x128xf32>
    %16 = arith.mulf %15, %15 : vector<8x128xf32>
    %cst_7 = arith.constant dense<0.000000e+00> : vector<8xf32>
    %17 = vector.multi_reduction <add>, %16, %cst_7 [1] : vector<8x128xf32> to vector<8xf32>
    %18 = vector.shape_cast %17 : vector<8xf32> to vector<8x1xf32>
    %cst_8 = arith.constant 3.125000e-02 : f32
    %19 = vector.broadcast %cst_8 : f32 to vector<8x1xf32>
    %20 = arith.mulf %18, %19 : vector<8x1xf32>
    %cst_9 = arith.constant 9.99999974E-6 : f32
    %21 = vector.broadcast %cst_9 : f32 to vector<8x1xf32>
    %22 = arith.addf %20, %21 : vector<8x1xf32>
    %23 = math.rsqrt %22 : vector<8x1xf32>
    %24 = vector.broadcast %23 : vector<8x1xf32> to vector<8x128xf32>
    %25 = arith.mulf %15, %24 : vector<8x128xf32>
    %26 = vector.broadcast %1 : vector<1x128xf32> to vector<8x128xf32>
    %27 = arith.mulf %25, %26 : vector<8x128xf32>
    %28 = vector.broadcast %2 : vector<1x128xf32> to vector<8x128xf32>
    %29 = arith.addf %27, %28 : vector<8x128xf32>
    %30 = arith.truncf %29 : vector<8x128xf32> to vector<8x128xbf16>
    %c0_10 = arith.constant 0 : index
    %c0_11 = arith.constant 0 : index
    %31 = vector.load %arg4[%c0_10, %c0_11] : memref<128x128xbf16, #tpu.memory_space<vmem>>, vector<128x128xbf16>
    %cst_12 = arith.constant dense<0.000000e+00> : vector<8x128xf32>
    %32 = tpu.matmul %30, %31, %cst_12 {dimension_numbers = #tpu.dot_dimension_numbers<[1], [0], [0], [1], [0, 0, 1, 1], [], []>} : vector<8x128xbf16>, vector<128x128xbf16>, vector<8x128xf32> -> vector<8x128xf32>
    %c0_13 = arith.constant 0 : index
    %c0_14 = arith.constant 0 : index
    %33 = vector.load %arg5[%c0_13, %c0_14] : memref<1x128xf32, #tpu.memory_space<vmem>>, vector<1x128xf32>
    %34 = vector.broadcast %33 : vector<1x128xf32> to vector<8x128xf32>
    %35 = arith.addf %32, %34 : vector<8x128xf32>
    %cst_15 = arith.constant 0.000000e+00 : f32
    %36 = vector.broadcast %cst_15 : f32 to vector<8x128xf32>
    %37 = arith.maximumf %35, %36 : vector<8x128xf32>
    %38 = arith.truncf %37 : vector<8x128xf32> to vector<8x128xbf16>
    %c0_16 = arith.constant 0 : index
    %c0_17 = arith.constant 0 : index
    %39 = vector.load %arg6[%c0_16, %c0_17] : memref<128x128xbf16, #tpu.memory_space<vmem>>, vector<128x128xbf16>
    %cst_18 = arith.constant dense<0.000000e+00> : vector<8x128xf32>
    %40 = tpu.matmul %38, %39, %cst_18 {dimension_numbers = #tpu.dot_dimension_numbers<[1], [0], [0], [1], [0, 0, 1, 1], [], []>} : vector<8x128xbf16>, vector<128x128xbf16>, vector<8x128xf32> -> vector<8x128xf32>
    %41 = arith.addf %0, %40 : vector<8x128xf32>
    %c0_19 = arith.constant 0 : index
    %c0_20 = arith.constant 0 : index
    %42 = vector.load %arg7[%c0_19, %c0_20] : memref<1x128xf32, #tpu.memory_space<vmem>>, vector<1x128xf32>
    %43 = vector.broadcast %42 : vector<1x128xf32> to vector<8x128xf32>
    %44 = arith.addf %41, %43 : vector<8x128xf32>
    %c0_21 = arith.constant 0 : index
    %c0_22 = arith.constant 0 : index
    %45 = vector.load %arg8[%c0_21, %c0_22] : memref<8x128xf32, #tpu.memory_space<vmem>>, vector<8x128xf32>
    tpu.vector_store %arg8[%c0_21, %c0_22], %44 {strides = array<i32>} : memref<8x128xf32, #tpu.memory_space<vmem>>, vector<8x128xf32>,
    return
  }
  func.func @transform_0(%arg0: i32) -> (i32, i32) {
    %c0_i32 = arith.constant 0 : i32
    %c0_i32_0 = arith.constant 0 : i32
    return %arg0, %c0_i32 : i32, i32
  }
  func.func @transform_1(%arg0: i32) -> (i32, i32) {
    %c0_i32 = arith.constant 0 : i32
    %c0_i32_0 = arith.constant 0 : i32
    %c0_i32_1 = arith.constant 0 : i32
    return %c0_i32, %c0_i32_0 : i32, i32
  }
  func.func @transform_2(%arg0: i32) -> (i32, i32) {
    %c0_i32 = arith.constant 0 : i32
    %c0_i32_0 = arith.constant 0 : i32
    %c0_i32_1 = arith.constant 0 : i32
    return %c0_i32, %c0_i32_0 : i32, i32
  }
  func.func @transform_3(%arg0: i32) -> (i32, i32) {
    %c0_i32 = arith.constant 0 : i32
    %c0_i32_0 = arith.constant 0 : i32
    %c0_i32_1 = arith.constant 0 : i32
    return %c0_i32, %c0_i32_0 : i32, i32
  }
  func.func @transform_4(%arg0: i32) -> (i32, i32) {
    %c0_i32 = arith.constant 0 : i32
    %c0_i32_0 = arith.constant 0 : i32
    %c0_i32_1 = arith.constant 0 : i32
    return %c0_i32, %c0_i32_0 : i32, i32
  }
  func.func @transform_5(%arg0: i32) -> (i32, i32) {
    %c0_i32 = arith.constant 0 : i32
    %c0_i32_0 = arith.constant 0 : i32
    %c0_i32_1 = arith.constant 0 : i32
    return %c0_i32, %c0_i32_0 : i32, i32
  }
  func.func @transform_6(%arg0: i32) -> (i32, i32) {
    %c0_i32 = arith.constant 0 : i32
    %c0_i32_0 = arith.constant 0 : i32
    %c0_i32_1 = arith.constant 0 : i32
    return %c0_i32, %c0_i32_0 : i32, i32
  }
  func.func @transform_7(%arg0: i32) -> (i32, i32) {
    %c0_i32 = arith.constant 0 : i32
    %c0_i32_0 = arith.constant 0 : i32
    return %arg0, %c0_i32 : i32, i32
  }
}

</mosaic_0001>

<llo_original>
// kernel: tpu_custom_call.1
$region0: #{tpu_custom_call.1}
  #allocation0 [shape = 'u32[]', space=smem, size = 0x4, offset = 0x4, fixed_abs, tag = 'smem constant byte address 0x4 - core index']
  #allocation1 [shape = 'u32[72,128]{1,0:T(1,128)}', space=vmem, size = 0x9000, scoped, tag = 'internal scratch']
  %s0 = inlined_call_operand.hbm [shape: f32[16,128], index: 0, kind: input, shape index: {}]
  %s1 = inlined_call_operand.hbm [shape: f32[1,128], index: 1, kind: input, shape index: {}]
  %s2 = inlined_call_operand.vmem [shape: f32[1,128], index: 2, kind: input, shape index: {}]
  %s3 = inlined_call_operand.hbm [shape: bf16[128,128], index: 3, kind: input, shape index: {}]
  %s4 = inlined_call_operand.vmem [shape: f32[1,128], index: 4, kind: input, shape index: {}]
  %s5 = inlined_call_operand.hbm [shape: bf16[128,128], index: 5, kind: input, shape index: {}]
  %s6 = inlined_call_operand.vmem [shape: f32[1,128], index: 6, kind: input, shape index: {}]
  %s7 = inlined_call_operand.hbm [shape: f32[16,128], index: 7, kind: output, shape index: {}]
  %s8 = sld [smem:[#allocation0]]
  $region77: #{tpu_custom_call.1} parent=0
    _
  %s10 = ssub.s32 1, %s8
  %s11 = scalar_select 0, %s10, %s8
  $region1: #{tpu_custom_call.1} parent=0
    #allocation2 [shape = 'u8[8192]{0}', space=vmem, size = 0x2000, scoped, tag = 'input window, operand 0']
    #allocation3 [shape = 's32[2]{0}', space=sflag, size = 0x8, scoped, tag = 'scoped memory for tpu_custom_call.1']
    #allocation4 [shape = 's32[2]{0}', space=sflag, size = 0x8, scoped, tag = 'scoped memory for tpu_custom_call.1']
    #allocation5 [shape = 'u8[512]{0}', space=vmem, size = 0x400, scoped, tag = 'input window, operand 1, single buffered']
    #allocation6 [shape = 's32[1]{0}', space=sflag, size = 0x4, scoped, tag = 'scoped memory for tpu_custom_call.1']
    #allocation7 [shape = 'u8[32768]{0}', space=vmem, size = 0x8000, scoped, tag = 'input window, operand 3, single buffered']
    #allocation8 [shape = 'u8[32768]{0}', space=vmem, size = 0x8000, scoped, tag = 'input window, operand 5, single buffered']
    #allocation9 [shape = 's32[1]{0}', space=sflag, size = 0x4, scoped, tag = 'scoped memory for tpu_custom_call.1']
    #allocation10 [shape = 'u8[8192]{0}', space=vmem, size = 0x2000, scoped, tag = 'output window, operand 0']
    %12 = vsyncpa [#allocation3], 0
    %s13 = scalar_lea.sflag [#allocation3], 1
    %14 = vsyncpa %s13, 0
    %15 = vsyncpa [#allocation6], 0
    %16 = vsyncpa [#allocation9], 0
    %17 = vsyncpa [#allocation4], 0
    %s18 = scalar_lea.sflag [#allocation4], 1
    %19 = vsyncpa %s18, 0
    loop: start=0, step=1, limit=4
    $region2: #{tpu_custom_call.1} parent=1 // loop_pre_header
      _
    $region3: #{tpu_custom_call.1} parent=1 // loop_header
      %s21 = sphi 0, %s25
      %p22 = scmp.ge.s32.totalorder %s21, 4
      %s31 = sphi 0, %s33
      %s34 = sphi 0, %s31
      %s35 = sphi 0, %s34
      %s51 = sphi 0, %s35
      %s55 = sphi 0, %s55
      %s57 = sphi 0, %s55
      %s58 = sphi 0, %s57
      %s72 = sphi 0, %s58
      %s76 = sphi 0, %s76
      %s78 = sphi 0, %s76
      %s79 = sphi 0, %s78
      %s93 = sphi 0, %s79
      %s97 = sphi 0, %s97
      %s99 = sphi 0, %s97
      %s100 = sphi 0, %s99
      %s114 = sphi 0, %s100
      %s118 = sphi 0, %s118
      %s120 = sphi 0, %s118
      %s121 = sphi 0, %s120
      %s135 = sphi 0, %s121
      %s139 = sphi 0, %s139
      %s141 = sphi 0, %s139
      %s142 = sphi 0, %s141
      %s156 = sphi 0, %s142
      %s160 = sphi 0, %s160
      %s162 = sphi 0, %s160
      %s163 = sphi 0, %s162
      %s177 = sphi 0, %s163
      %s183 = sphi 0, %s185
      %s186 = sphi 0, %s183
      %s187 = sphi 0, %s186
      %s203 = sphi 0, %s187
    $region4: #{tpu_custom_call.1} parent=1 // loop_header_branch
      %24 = sbr.rel (%p22) target = $region8
    $region5: #{tpu_custom_call.1} parent=1 // loop_body
      %s26 = ssub.s32 %s21, 1
      %s27 = ssub.s32 %s21, 2
      %s28 = sadd.s32 %s21, 1
      %s29 = ssub.s32 %s21, %s28
      %p30 = scmp.eq.s32.totalorder %s29, 0
      %s32 = sadd.s32 %s31, 1
      %s33 = scalar_select %p30, %s31, %s32
      %p36 = pneg %p30
      %p37 = scmp.eq.s32.totalorder %s21, 1
      %p38 = por %p36, %p37
      %p39 = scmp.ne.s32.totalorder %s31, %s34
      %p40 = scmp.eq.s32.totalorder %s21, 0
      %p41 = por %p39, %p40
      %p42 = scmp.ne.s32.totalorder %s31, %s34
      %p43 = scmp.eq.s32.totalorder %s26, 1
      %p44 = por %p42, %p43
      %p45 = scmp.ne.s32.totalorder %s34, %s35
      %p46 = scmp.eq.s32.totalorder %s26, 0
      %p47 = por %p45, %p46
      %p48 = scmp.ne.s32.totalorder %s34, %s35
      %p49 = scmp.eq.s32.totalorder %s27, 1
      %p50 = por %p48, %p49
      %p52 = scmp.ne.s32.totalorder %s35, %s51
      %p53 = scmp.eq.s32.totalorder %s27, 0
      %p54 = por %p52, %p53
      %s56 = sadd.s32 %s55, 1
      %p59 = scmp.eq.s32.totalorder %s21, 1
      %p60 = scmp.ne.s32.totalorder %s55, %s57
      %p61 = scmp.eq.s32.totalorder %s21, 0
      %p62 = por %p60, %p61
      %p63 = scmp.ne.s32.totalorder %s55, %s57
      %p64 = scmp.eq.s32.totalorder %s26, 1
      %p65 = por %p63, %p64
      %p66 = scmp.ne.s32.totalorder %s57, %s58
      %p67 = scmp.eq.s32.totalorder %s26, 0
      %p68 = por %p66, %p67
      %p69 = scmp.ne.s32.totalorder %s57, %s58
      %p70 = scmp.eq.s32.totalorder %s27, 1
      %p71 = por %p69, %p70
      %p73 = scmp.ne.s32.totalorder %s58, %s72
      %p74 = scmp.eq.s32.totalorder %s27, 0
      %p75 = por %p73, %p74
      %s77 = sadd.s32 %s76, 1
      %p80 = scmp.eq.s32.totalorder %s21, 1
      %p81 = scmp.ne.s32.totalorder %s76, %s78
      %p82 = scmp.eq.s32.totalorder %s21, 0
      %p83 = por %p81, %p82
      %p84 = scmp.ne.s32.totalorder %s76, %s78
      %p85 = scmp.eq.s32.totalorder %s26, 1
      %p86 = por %p84, %p85
      %p87 = scmp.ne.s32.totalorder %s78, %s79
      %p88 = scmp.eq.s32.totalorder %s26, 0
      %p89 = por %p87, %p88
      %p90 = scmp.ne.s32.totalorder %s78, %s79
      %p91 = scmp.eq.s32.totalorder %s27, 1
      %p92 = por %p90, %p91
      %p94 = scmp.ne.s32.totalorder %s79, %s93
      %p95 = scmp.eq.s32.totalorder %s27, 0
      %p96 = por %p94, %p95
      %s98 = sadd.s32 %s97, 1
      %p101 = scmp.eq.s32.totalorder %s21, 1
      %p102 = scmp.ne.s32.totalorder %s97, %s99
      %p103 = scmp.eq.s32.totalorder %s21, 0
      %p104 = por %p102, %p103
      %p105 = scmp.ne.s32.totalorder %s97, %s99
      %p106 = scmp.eq.s32.totalorder %s26, 1
      %p107 = por %p105, %p106
      %p108 = scmp.ne.s32.totalorder %s99, %s100
      %p109 = scmp.eq.s32.totalorder %s26, 0
      %p110 = por %p108, %p109
      %p111 = scmp.ne.s32.totalorder %s99, %s100
      %p112 = scmp.eq.s32.totalorder %s27, 1
      %p113 = por %p111, %p112
      %p115 = scmp.ne.s32.totalorder %s100, %s114
      %p116 = scmp.eq.s32.totalorder %s27, 0
      %p117 = por %p115, %p116
      %s119 = sadd.s32 %s118, 1
      %p122 = scmp.eq.s32.totalorder %s21, 1
      %p123 = scmp.ne.s32.totalorder %s118, %s120
      %p124 = scmp.eq.s32.totalorder %s21, 0
      %p125 = por %p123, %p124
      %p126 = scmp.ne.s32.totalorder %s118, %s120
      %p127 = scmp.eq.s32.totalorder %s26, 1
      %p128 = por %p126, %p127
      %p129 = scmp.ne.s32.totalorder %s120, %s121
      %p130 = scmp.eq.s32.totalorder %s26, 0
      %p131 = por %p129, %p130
      %p132 = scmp.ne.s32.totalorder %s120, %s121
      %p133 = scmp.eq.s32.totalorder %s27, 1
      %p134 = por %p132, %p133
      %p136 = scmp.ne.s32.totalorder %s121, %s135
      %p137 = scmp.eq.s32.totalorder %s27, 0
      %p138 = por %p136, %p137
      %s140 = sadd.s32 %s139, 1
      %p143 = scmp.eq.s32.totalorder %s21, 1
      %p144 = scmp.ne.s32.totalorder %s139, %s141
      %p145 = scmp.eq.s32.totalorder %s21, 0
      %p146 = por %p144, %p145
      %p147 = scmp.ne.s32.totalorder %s139, %s141
      %p148 = scmp.eq.s32.totalorder %s26, 1
      %p149 = por %p147, %p148
      %p150 = scmp.ne.s32.totalorder %s141, %s142
      %p151 = scmp.eq.s32.totalorder %s26, 0
      %p152 = por %p150, %p151
      %p153 = scmp.ne.s32.totalorder %s141, %s142
      %p154 = scmp.eq.s32.totalorder %s27, 1
      %p155 = por %p153, %p154
      %p157 = scmp.ne.s32.totalorder %s142, %s156
      %p158 = scmp.eq.s32.totalorder %s27, 0
      %p159 = por %p157, %p158
      %s161 = sadd.s32 %s160, 1
      %p164 = scmp.eq.s32.totalorder %s21, 1
      %p165 = scmp.ne.s32.totalorder %s160, %s162
      %p166 = scmp.eq.s32.totalorder %s21, 0
      %p167 = por %p165, %p166
      %p168 = scmp.ne.s32.totalorder %s160, %s162
      %p169 = scmp.eq.s32.totalorder %s26, 1
      %p170 = por %p168, %p169
      %p171 = scmp.ne.s32.totalorder %s162, %s163
      %p172 = scmp.eq.s32.totalorder %s26, 0
      %p173 = por %p171, %p172
      %p174 = scmp.ne.s32.totalorder %s162, %s163
      %p175 = scmp.eq.s32.totalorder %s27, 1
      %p176 = por %p174, %p175
      %p178 = scmp.ne.s32.totalorder %s163, %s177
      %p179 = scmp.eq.s32.totalorder %s27, 0
      %p180 = por %p178, %p179
      %s181 = ssub.s32 %s21, %s28
      %p182 = scmp.eq.s32.totalorder %s181, 0
      %s184 = sadd.s32 %s183, 1
      %s185 = scalar_select %p182, %s183, %s184
      %p188 = pneg %p182
      %p189 = scmp.eq.s32.totalorder %s21, 1
      %p190 = por %p188, %p189
      %p191 = scmp.ne.s32.totalorder %s183, %s186
      %p192 = scmp.eq.s32.totalorder %s21, 0
      %p193 = por %p191, %p192
      %p194 = scmp.ne.s32.totalorder %s183, %s186
      %p195 = scmp.eq.s32.totalorder %s26, 1
      %p196 = por %p194, %p195
      %p197 = scmp.ne.s32.totalorder %s186, %s187
      %p198 = scmp.eq.s32.totalorder %s26, 0
      %p199 = por %p197, %p198
      %p200 = scmp.ne.s32.totalorder %s186, %s187
      %p201 = scmp.eq.s32.totalorder %s27, 1
      %p202 = por %p200, %p201
      %p204 = scmp.ne.s32.totalorder %s187, %s203
      %p205 = scmp.eq.s32.totalorder %s27, 0
      %p206 = por %p204, %p205
      %p207 = scmp.le.s32.totalorder 1, %s21
      %p208 = scmp.lt.s32.totalorder %s21, 3
      %p209 = pnand %p207, %p208
      %p210 = pneg %p209
      // Predicated region
      $region9: #{tpu_custom_call.1} parent=5 // pred_check
        _
      $region10: #{tpu_custom_call.1} parent=5 // pred_check_branch
        %212 = sbr.rel (%p209) target = $region12
      $region11: #{tpu_custom_call.1} parent=5 // pred_region
        %s213 = ssub.s32 %s21, 1
        // Predicated region
        $region13: #{tpu_custom_call.1} parent=11 // pred_check
          %p214 = pneg %p68
        $region14: #{tpu_custom_call.1} parent=11 // pred_check_branch
          %216 = sbr.rel (%p214) target = $region16
        $region15: #{tpu_custom_call.1} parent=11 // pred_region
          %218 = vsyncadd [#allocation6], 0
          %s220 = sshll.u32 %s1, 4
          %s221 = int_to_ptr.hbm [resolvable:$true] %s220
          %s222 = sshll.u32 [#allocation5], 4
          %s223 = int_to_ptr.vmem [resolvable:$true] %s222
          %225 = dma.hbm_to_vmem [thread:$0]  %s221, 16, %s223, [#allocation6]
        $region16: #{tpu_custom_call.1} parent=11 // pred_fallthru
          _
        // Predicated region
        $region17: #{tpu_custom_call.1} parent=11 // pred_check
          %p226 = pneg %p89
        $region18: #{tpu_custom_call.1} parent=11 // pred_check_branch
          %228 = sbr.rel (%p226) target = $region20
        $region19: #{tpu_custom_call.1} parent=11 // pred_region
          _
        $region20: #{tpu_custom_call.1} parent=11 // pred_fallthru
          _
        // Predicated region
        $region21: #{tpu_custom_call.1} parent=11 // pred_check
          %p229 = pneg %p110
        $region22: #{tpu_custom_call.1} parent=11 // pred_check_branch
          %231 = sbr.rel (%p229) target = $region24
        $region23: #{tpu_custom_call.1} parent=11 // pred_region
          %233 = vsyncadd [#allocation6], 0
          %s234 = sshll.u32 %s3, 4
          %s235 = int_to_ptr.hbm [resolvable:$true] %s234
          %s236 = sshll.u32 [#allocation7], 4
          %s237 = int_to_ptr.vmem [resolvable:$true] %s236
          %242 = dma.hbm_to_vmem [thread:$0]  %s235, 1024, %s237, [#allocation6], 64, 64, 4
        $region24: #{tpu_custom_call.1} parent=11 // pred_fallthru
          _
        // Predicated region
        $region25: #{tpu_custom_call.1} parent=11 // pred_check
          %p243 = pneg %p131
        $region26: #{tpu_custom_call.1} parent=11 // pred_check_branch
          %245 = sbr.rel (%p243) target = $region28
        $region27: #{tpu_custom_call.1} parent=11 // pred_region
          _
        $region28: #{tpu_custom_call.1} parent=11 // pred_fallthru
          _
        // Predicated region
        $region29: #{tpu_custom_call.1} parent=11 // pred_check
          %p246 = pneg %p152
        $region30: #{tpu_custom_call.1} parent=11 // pred_check_branch
          %248 = sbr.rel (%p246) target = $region32
        $region31: #{tpu_custom_call.1} parent=11 // pred_region
          %250 = vsyncadd [#allocation9], 0
          %s251 = sshll.u32 %s5, 4
          %s252 = int_to_ptr.hbm [resolvable:$true] %s251
          %s253 = sshll.u32 [#allocation8], 4
          %s254 = int_to_ptr.vmem [resolvable:$true] %s253
          %259 = dma.hbm_to_vmem [thread:$0]  %s252, 1024, %s254, [#allocation9], 64, 64, 4
        $region32: #{tpu_custom_call.1} parent=11 // pred_fallthru
          _
        // Predicated region
        $region33: #{tpu_custom_call.1} parent=11 // pred_check
          %p260 = pneg %p173
        $region34: #{tpu_custom_call.1} parent=11 // pred_check_branch
          %262 = sbr.rel (%p260) target = $region36
        $region35: #{tpu_custom_call.1} parent=11 // pred_region
          _
        $region36: #{tpu_custom_call.1} parent=11 // pred_fallthru
          _
      $region12: #{tpu_custom_call.1} parent=5 // pred_fallthru
        _
      %p263 = scmp.lt.s32.totalorder %s21, 2
      // Predicated region
      $region37: #{tpu_custom_call.1} parent=5 // pred_check
        %p264 = pneg %p263
      $region38: #{tpu_custom_call.1} parent=5 // pred_check_branch
        %266 = sbr.rel (%p264) target = $region40
      $region39: #{tpu_custom_call.1} parent=5 // pred_region
        // Predicated region
        $region41: #{tpu_custom_call.1} parent=39 // pred_check
          %p267 = pneg %p41
        $region42: #{tpu_custom_call.1} parent=39 // pred_check_branch
          %269 = sbr.rel (%p267) target = $region44
        $region43: #{tpu_custom_call.1} parent=39 // pred_region
          %s270 = sand.u32 %s31, 1
          %s271 = scalar_lea.sflag [#allocation3], %s270
          %s272 = sand.u32 %s31, 1
          %s273 = smul.addr %s272, 8
          %s274 = scalar_lea.vmem [#allocation2], %s273
          %276 = vsyncadd %s271, 0
          %s277 = smul.addr %s21, 8
          %s278 = scalar_lea.hbm %s0, %s277
          %s280 = sshll.u32 %s278, 4
          %s281 = int_to_ptr.hbm [resolvable:$true] %s280
          %s282 = sshll.u32 %s274, 4
          %s283 = int_to_ptr.vmem [resolvable:$true] %s282
          %285 = dma.hbm_to_vmem [thread:$0]  %s281, 128, %s283, %s271
        $region44: #{tpu_custom_call.1} parent=39 // pred_fallthru
          _
      $region40: #{tpu_custom_call.1} parent=5 // pred_fallthru
        _
      %p286 = scmp.le.s32.totalorder 1, %s21
      %p287 = scmp.lt.s32.totalorder %s21, 3
      %p288 = pnand %p286, %p287
      %p289 = pneg %p288
      // Predicated region
      $region45: #{tpu_custom_call.1} parent=5 // pred_check
        _
      $region46: #{tpu_custom_call.1} parent=5 // pred_check_branch
        %291 = sbr.rel (%p288) target = $region48
      $region47: #{tpu_custom_call.1} parent=5 // pred_region
        %s292 = ssub.s32 %s21, 1
        %s293 = sand.u32 %s34, 1
        %s294 = scalar_lea.sflag [#allocation3], %s293
        %s295 = sand.u32 %s34, 1
        %s296 = smul.addr %s295, 8
        %s297 = scalar_lea.vmem [#allocation2], %s296
        // Predicated region
        $region49: #{tpu_custom_call.1} parent=47 // pred_check
          %p298 = pneg %p47
        $region50: #{tpu_custom_call.1} parent=47 // pred_check_branch
          %300 = sbr.rel (%p298) target = $region52
        $region51: #{tpu_custom_call.1} parent=47 // pred_region
          %302 = dma.done %s294, 128
        $region52: #{tpu_custom_call.1} parent=47 // pred_fallthru
          _
        // Predicated region
        $region53: #{tpu_custom_call.1} parent=47 // pred_check
          %p303 = pneg %p68
        $region54: #{tpu_custom_call.1} parent=47 // pred_check_branch
          %305 = sbr.rel (%p303) target = $region56
        $region55: #{tpu_custom_call.1} parent=47 // pred_region
          %307 = dma.done [#allocation6], 16
        $region56: #{tpu_custom_call.1} parent=47 // pred_fallthru
          _
        // Predicated region
        $region57: #{tpu_custom_call.1} parent=47 // pred_check
          %p308 = pneg %p110
        $region58: #{tpu_custom_call.1} parent=47 // pred_check_branch
          %310 = sbr.rel (%p308) target = $region60
        $region59: #{tpu_custom_call.1} parent=47 // pred_region
          %312 = dma.done [#allocation6], 1024
        $region60: #{tpu_custom_call.1} parent=47 // pred_fallthru
          _
        // Predicated region
        $region61: #{tpu_custom_call.1} parent=47 // pred_check
          %p313 = pneg %p152
        $region62: #{tpu_custom_call.1} parent=47 // pred_check_branch
          %315 = sbr.rel (%p313) target = $region64
        $region63: #{tpu_custom_call.1} parent=47 // pred_region
          %317 = dma.done [#allocation9], 1024
        $region64: #{tpu_custom_call.1} parent=47 // pred_fallthru
          _
        %s318 = sand.u32 %s34, 1
        %s319 = scalar_lea.sflag [#allocation3], %s318
        %s320 = sand.u32 %s34, 1
        %s321 = smul.addr %s320, 8
        %s322 = scalar_lea.vmem [#allocation2], %s321
        %p323 = pneg %p47
        %p324 = pneg %p44
        %p325 = pneg %p68
        %p326 = pneg %p65
        %p327 = pneg %p89
        %p328 = pneg %p86
        %p329 = pneg %p110
        %p330 = pneg %p107
        %p331 = pneg %p131
        %p332 = pneg %p128
        %p333 = pneg %p152
        %p334 = pneg %p149
        %p335 = pneg %p173
        %p336 = pneg %p170
        %p337 = pneg %p199
        %p338 = pneg %p196
        %s339 = sand.u32 %s186, 1
        %s340 = scalar_lea.sflag [#allocation4], %s339
        %s341 = sand.u32 %s186, 1
        %s342 = smul.addr %s341, 8
        %s343 = scalar_lea.vmem [#allocation10], %s342
        %v344 = vld [vmem:[%s297] sm:$0xff]
        %v345 = vld [vmem:[#allocation5] sm:$0x1]
        %v346 = vld [vmem:[%s2] sm:$0x1]
        %347 = vadd.xlane.f32.xlu0 %v344
        %v348 = vpop.xlane.xlu0 %347
        %v349 = vmul.f32 %v348, 0.03125
        %v350 = vsub.f32 %v344, %v349
        %v351 = vlaneseq
        %v352 = vand.u32 %v351, 127
        %vm353 = vcmp.lt.s32.totalorder %v352, 32
        %v354 = vsel %vm353, 1, 0
        %vm355 = vcmp.eq.s32.totalorder %v354, 1
        %v356 = vsel %vm355, %v350, 0.0
        %v357 = vmul.f32 %v356, %v356
        %358 = vadd.xlane.f32.xlu0 %v357
        %v359 = vpop.xlane.xlu0 %358
        %v360 = vmul.f32 %v359, 0.03125
        %v361 = vadd.f32 %v360, 1e-05
        %v362 = vrsqrt.pop %v361
        %v363 = vmul.f32 %v362, %v361
        %v364 = vmul.f32 %v363, %v362
        %v365 = vmul.f32 0.5, %v364
        %v366 = vsub.f32 1.5, %v365
        %v367 = vmul.f32 %v362, %v366
        %vm368 = vweird.f32 %v361
        %vm369 = vweird.f32 %v362
        %vm370 = vmor %vm368, %vm369
        %v371 = vsel %vm370, %v362, %v367
        %v372 = vmul.f32 %v356, %v371
        %v374 = vperm.slane %v345, 0
        %v376 = vmul.f32 %v372, %v374
        %v378 = vperm.slane %v346, 0
        %v380 = vadd.f32 %v376, %v378
        %v381 = vpack.c.bf16 %v380, %v380
        %v382 = vld [vmem:[#allocation7] sm:$0xf]
        %v383 = vld [vmem:[#allocation7 + $0x4] sm:$0xf]
        %v384 = vld [vmem:[#allocation7 + $0x8] sm:$0xf]
        %v385 = vld [vmem:[#allocation7 + $0xc] sm:$0xf]
        %v386 = vld [vmem:[#allocation7 + $0x10] sm:$0xf]
        %v387 = vld [vmem:[#allocation7 + $0x14] sm:$0xf]
        %v388 = vld [vmem:[#allocation7 + $0x18] sm:$0xf]
        %v389 = vld [vmem:[#allocation7 + $0x1c] sm:$0xf]
        %v390 = vld [vmem:[#allocation7 + $0x20] sm:$0xf]
        %v391 = vld [vmem:[#allocation7 + $0x24] sm:$0xf]
        %v392 = vld [vmem:[#allocation7 + $0x28] sm:$0xf]
        %v393 = vld [vmem:[#allocation7 + $0x2c] sm:$0xf]
        %v394 = vld [vmem:[#allocation7 + $0x30] sm:$0xf]
        %v395 = vld [vmem:[#allocation7 + $0x34] sm:$0xf]
        %v396 = vld [vmem:[#allocation7 + $0x38] sm:$0xf]
        %v397 = vld [vmem:[#allocation7 + $0x3c] sm:$0xf]
        %v398 = vld [vmem:[%s4] sm:$0x1]
        %v400 = vperm.slane %v398, 0
        %v418 = vunpack.c.l.b16 %v382
        %v419 = vunpack.c.l.b16 %v383
        %v420 = vunpack.c.l.b16 %v384
        %v421 = vunpack.c.l.b16 %v385
        %v422 = vunpack.c.l.b16 %v386
        %v423 = vunpack.c.l.b16 %v387
        %v424 = vunpack.c.l.b16 %v388
        %v425 = vunpack.c.l.b16 %v389
        %v426 = vunpack.c.l.b16 %v390
        %v427 = vunpack.c.l.b16 %v391
        %v428 = vunpack.c.l.b16 %v392
        %v429 = vunpack.c.l.b16 %v393
        %v430 = vunpack.c.l.b16 %v394
        %v431 = vunpack.c.l.b16 %v395
        %v432 = vunpack.c.l.b16 %v396
        %v433 = vunpack.c.l.b16 %v397
        %v434 = vpack.c.b16 %v419, %v418
        %v435 = vpack.c.b16 %v421, %v420
        %v436 = vpack.c.b16 %v423, %v422
        %v437 = vpack.c.b16 %v425, %v424
        %v438 = vpack.c.b16 %v427, %v426
        %v439 = vpack.c.b16 %v429, %v428
        %v440 = vpack.c.b16 %v431, %v430
        %v441 = vpack.c.b16 %v433, %v432
        %450 = vmatpush.bf16.msra.mxu0 %v441
        %451 = vmatpush.bf16.msra.mxu0 %v440
        %452 = vmatpush.bf16.msra.mxu0 %v439
        %453 = vmatpush.bf16.msra.mxu0 %v438
        %454 = vmatpush.bf16.msra.mxu0 %v437
        %455 = vmatpush.bf16.msra.mxu0 %v436
        %456 = vmatpush.bf16.msra.mxu0 %v435
        %457 = vmatpush.bf16.msra.mxu0 %v434
        %458 = vmatmul.bf16.gmra.mxu0 %v381
        %v459 = vpop.f32.mrf.mxu0
        %v460 = vadd.f32 %v400, %v459
        %v461 = vpop.f32.mrf.mxu0
        %462 = vdwg.mxu0
        %v463 = vmax.f32 %v460, 0.0
        %v464 = vpack.c.bf16 %v463, %v463
        %v465 = vld [vmem:[#allocation8] sm:$0xf]
        %v466 = vld [vmem:[#allocation8 + $0x4] sm:$0xf]
        %v467 = vld [vmem:[#allocation8 + $0x8] sm:$0xf]
        %v468 = vld [vmem:[#allocation8 + $0xc] sm:$0xf]
        %v469 = vld [vmem:[#allocation8 + $0x10] sm:$0xf]
        %v470 = vld [vmem:[#allocation8 + $0x14] sm:$0xf]
        %v471 = vld [vmem:[#allocation8 + $0x18] sm:$0xf]
        %v472 = vld [vmem:[#allocation8 + $0x1c] sm:$0xf]
        %v473 = vld [vmem:[#allocation8 + $0x20] sm:$0xf]
        %v474 = vld [vmem:[#allocation8 + $0x24] sm:$0xf]
        %v475 = vld [vmem:[#allocation8 + $0x28] sm:$0xf]
        %v476 = vld [vmem:[#allocation8 + $0x2c] sm:$0xf]
        %v477 = vld [vmem:[#allocation8 + $0x30] sm:$0xf]
        %v478 = vld [vmem:[#allocation8 + $0x34] sm:$0xf]
        %v479 = vld [vmem:[#allocation8 + $0x38] sm:$0xf]
        %v480 = vld [vmem:[#allocation8 + $0x3c] sm:$0xf]
        %v497 = vunpack.c.l.b16 %v465
        %v498 = vunpack.c.l.b16 %v466
        %v499 = vunpack.c.l.b16 %v467
        %v500 = vunpack.c.l.b16 %v468
        %v501 = vunpack.c.l.b16 %v469
        %v502 = vunpack.c.l.b16 %v470
        %v503 = vunpack.c.l.b16 %v471
        %v504 = vunpack.c.l.b16 %v472
        %v505 = vunpack.c.l.b16 %v473
        %v506 = vunpack.c.l.b16 %v474
        %v507 = vunpack.c.l.b16 %v475
        %v508 = vunpack.c.l.b16 %v476
        %v509 = vunpack.c.l.b16 %v477
        %v510 = vunpack.c.l.b16 %v478
        %v511 = vunpack.c.l.b16 %v479
        %v512 = vunpack.c.l.b16 %v480
        %v513 = vpack.c.b16 %v498, %v497
        %v514 = vpack.c.b16 %v500, %v499
        %v515 = vpack.c.b16 %v502, %v501
        %v516 = vpack.c.b16 %v504, %v503
        %v517 = vpack.c.b16 %v506, %v505
        %v518 = vpack.c.b16 %v508, %v507
        %v519 = vpack.c.b16 %v510, %v509
        %v520 = vpack.c.b16 %v512, %v511
        %529 = vmatpush.bf16.msra.mxu0 %v520
        %530 = vmatpush.bf16.msra.mxu0 %v519
        %531 = vmatpush.bf16.msra.mxu0 %v518
        %532 = vmatpush.bf16.msra.mxu0 %v517
        %533 = vmatpush.bf16.msra.mxu0 %v516
        %534 = vmatpush.bf16.msra.mxu0 %v515
        %535 = vmatpush.bf16.msra.mxu0 %v514
        %536 = vmatpush.bf16.msra.mxu0 %v513
        %537 = vmatmul.bf16.gmra.mxu0 %v464
        %v538 = vpop.f32.mrf.mxu0
        %v539 = vadd.f32 0.0, %v538
        %v540 = vpop.f32.mrf.mxu0
        %541 = vdwg.mxu0
        %v542 = vadd.f32 %v344, %v539
        %v543 = vld [vmem:[%s6] sm:$0x1]
        %v545 = vperm.slane %v543, 0
        %v547 = vadd.f32 %v542, %v545
        %548 = vst [vmem:[%s343] sm:$0xff] %v547
        %s549 = sand.u32 %s186, 1
        %s550 = scalar_lea.sflag [#allocation4], %s549
        %s551 = sand.u32 %s186, 1
        %s552 = smul.addr %s551, 8
        %s553 = scalar_lea.vmem [#allocation10], %s552
        // Predicated region
        $region65: #{tpu_custom_call.1} parent=47 // pred_check
          %p554 = pneg %p196
        $region66: #{tpu_custom_call.1} parent=47 // pred_check_branch
          %556 = sbr.rel (%p554) target = $region68
        $region67: #{tpu_custom_call.1} parent=47 // pred_region
          %558 = vsyncadd %s550, 0
          %s559 = smul.addr %s26, 8
          %s560 = scalar_lea.hbm %s7, %s559
          %s562 = sshll.u32 %s553, 4
          %s563 = int_to_ptr.vmem [resolvable:$true] %s562
          %s564 = sshll.u32 %s560, 4
          %s565 = int_to_ptr.hbm [resolvable:$true] %s564
          %567 = dma.vmem_to_hbm [thread:$0]  %s563, 128, %s565, %s550
        $region68: #{tpu_custom_call.1} parent=47 // pred_fallthru
          _
      $region48: #{tpu_custom_call.1} parent=5 // pred_fallthru
        _
      %p568 = scmp.le.s32.totalorder 2, %s21
      // Predicated region
      $region69: #{tpu_custom_call.1} parent=5 // pred_check
        %p569 = pneg %p568
      $region70: #{tpu_custom_call.1} parent=5 // pred_check_branch
        %571 = sbr.rel (%p569) target = $region72
      $region71: #{tpu_custom_call.1} parent=5 // pred_region
        %s572 = ssub.s32 %s21, 2
        // Predicated region
        $region73: #{tpu_custom_call.1} parent=71 // pred_check
          %p573 = pneg %p202
        $region74: #{tpu_custom_call.1} parent=71 // pred_check_branch
          %575 = sbr.rel (%p573) target = $region76
        $region75: #{tpu_custom_call.1} parent=71 // pred_region
          %s576 = sand.u32 %s187, 1
          %s577 = scalar_lea.sflag [#allocation4], %s576
          %s578 = sand.u32 %s187, 1
          %s579 = smul.addr %s578, 8
          %s580 = scalar_lea.vmem [#allocation10], %s579
          %582 = dma.done %s577, 128
        $region76: #{tpu_custom_call.1} parent=71 // pred_fallthru
          _
      $region72: #{tpu_custom_call.1} parent=5 // pred_fallthru
        _
    $region6: #{tpu_custom_call.1} parent=1 // loop_footer
      %s25 = sadd.s32 1, %s21
    $region7: #{tpu_custom_call.1} parent=1 // loop_footer_branch
      %20 = sbr.rel target = $region3
    $region8: #{tpu_custom_call.1} parent=1 // loop_exit
      _
    %583 = vsyncpa [#allocation3], 1
    %s584 = scalar_lea.sflag [#allocation3], 1
    %585 = vsyncpa %s584, 1
    %586 = vsyncpa [#allocation6], 1
    %587 = vsyncpa [#allocation9], 1
    %588 = vsyncpa [#allocation4], 1
    %s589 = scalar_lea.sflag [#allocation4], 1
    %590 = vsyncpa %s589, 1

// kernel: tpu_custom_call.1
$region0: #{tpu_custom_call.1}
  #allocation0 [shape = 'u32[]', space=smem, size = 0x4, offset = 0x4, fixed_abs, tag = 'smem constant byte address 0x4 - core index']
  #allocation1 [shape = 'u32[72,128]{1,0:T(1,128)}', space=vmem, size = 0x9000, scoped, tag = 'internal scratch']
  %s0 = inlined_call_operand.hbm [shape: f32[16,128], index: 0, kind: input, shape index: {}]
  %s1 = inlined_call_operand.hbm [shape: f32[1,128], index: 1, kind: input, shape index: {}]
  %s2 = inlined_call_operand.vmem [shape: f32[1,128], index: 2, kind: input, shape index: {}]
  %s3 = inlined_call_operand.hbm [shape: bf16[128,128], index: 3, kind: input, shape index: {}]
  %s4 = inlined_call_operand.vmem [shape: f32[1,128], index: 4, kind: input, shape index: {}]
  %s5 = inlined_call_operand.hbm [shape: bf16[128,128], index: 5, kind: input, shape index: {}]
  %s6 = inlined_call_operand.vmem [shape: f32[1,128], index: 6, kind: input, shape index: {}]
  %s7 = inlined_call_operand.hbm [shape: f32[16,128], index: 7, kind: output, shape index: {}]
  %s8 = sld [smem:[#allocation0]]
  $region77: #{tpu_custom_call.1} parent=0
    _
  %s10 = ssub.s32 1, %s8
  %s11 = scalar_select 0, %s10, %s8
  $region1: #{tpu_custom_call.1} parent=0
    #allocation2 [shape = 'u8[8192]{0}', space=vmem, size = 0x2000, scoped, tag = 'input window, operand 0']
    #allocation3 [shape = 's32[2]{0}', space=sflag, size = 0x8, scoped, tag = 'scoped memory for tpu_custom_call.1']
    #allocation4 [shape = 's32[2]{0}', space=sflag, size = 0x8, scoped, tag = 'scoped memory for tpu_custom_call.1']
    #allocation5 [shape = 'u8[512]{0}', space=vmem, size = 0x400, scoped, tag = 'input window, operand 1, single buffered']
    #allocation6 [shape = 's32[1]{0}', space=sflag, size = 0x4, scoped, tag = 'scoped memory for tpu_custom_call.1']
    #allocation7 [shape = 'u8[32768]{0}', space=vmem, size = 0x8000, scoped, tag = 'input window, operand 3, single buffered']
    #allocation8 [shape = 'u8[32768]{0}', space=vmem, size = 0x8000, scoped, tag = 'input window, operand 5, single buffered']
    #allocation9 [shape = 's32[1]{0}', space=sflag, size = 0x4, scoped, tag = 'scoped memory for tpu_custom_call.1']
    #allocation10 [shape = 'u8[8192]{0}', space=vmem, size = 0x2000, scoped, tag = 'output window, operand 0']
    %12 = vsyncpa [#allocation3], 0
    %s13 = scalar_lea.sflag [#allocation3], 1
    %14 = vsyncpa %s13, 0
    %15 = vsyncpa [#allocation6], 0
    %16 = vsyncpa [#allocation9], 0
    %17 = vsyncpa [#allocation4], 0
    %s18 = scalar_lea.sflag [#allocation4], 1
    %19 = vsyncpa %s18, 0
    loop: start=0, step=1, limit=4
    $region2: #{tpu_custom_call.1} parent=1 // loop_pre_header
      _
    $region3: #{tpu_custom_call.1} parent=1 // loop_header
      %s21 = sphi 0, %s25
      %p22 = scmp.ge.s32.totalorder %s21, 4
      %s31 = sphi 0, %s33
      %s34 = sphi 0, %s31
      %s35 = sphi 0, %s34
      %s51 = sphi 0, %s35
      %s55 = sphi 0, %s55
      %s57 = sphi 0, %s55
      %s58 = sphi 0, %s57
      %s72 = sphi 0, %s58
      %s76 = sphi 0, %s76
      %s78 = sphi 0, %s76
      %s79 = sphi 0, %s78
      %s93 = sphi 0, %s79
      %s97 = sphi 0, %s97
      %s99 = sphi 0, %s97
      %s100 = sphi 0, %s99
      %s114 = sphi 0, %s100
      %s118 = sphi 0, %s118
      %s120 = sphi 0, %s118
      %s121 = sphi 0, %s120
      %s135 = sphi 0, %s121
      %s139 = sphi 0, %s139
      %s141 = sphi 0, %s139
      %s142 = sphi 0, %s141
      %s156 = sphi 0, %s142
      %s160 = sphi 0, %s160
      %s162 = sphi 0, %s160
      %s163 = sphi 0, %s162
      %s177 = sphi 0, %s163
      %s183 = sphi 0, %s185
      %s186 = sphi 0, %s183
      %s187 = sphi 0, %s186
      %s203 = sphi 0, %s187
    $region4: #{tpu_custom_call.1} parent=1 // loop_header_branch
      %24 = sbr.rel (%p22) target = $region8
    $region5: #{tpu_custom_call.1} parent=1 // loop_body
      %s26 = ssub.s32 %s21, 1
      %s27 = ssub.s32 %s21, 2
      %s28 = sadd.s32 %s21, 1
      %s29 = ssub.s32 %s21, %s28
      %p30 = scmp.eq.s32.totalorder %s29, 0
      %s32 = sadd.s32 %s31, 1
      %s33 = scalar_select %p30, %s31, %s32
      %p36 = pneg %p30
      %p37 = scmp.eq.s32.totalorder %s21, 1
      %p38 = por %p36, %p37
      %p39 = scmp.ne.s32.totalorder %s31, %s34
      %p40 = scmp.eq.s32.totalorder %s21, 0
      %p41 = por %p39, %p40
      %p42 = scmp.ne.s32.totalorder %s31, %s34
      %p43 = scmp.eq.s32.totalorder %s26, 1
      %p44 = por %p42, %p43
      %p45 = scmp.ne.s32.totalorder %s34, %s35
      %p46 = scmp.eq.s32.totalorder %s26, 0
      %p47 = por %p45, %p46
      %p48 = scmp.ne.s32.totalorder %s34, %s35
      %p49 = scmp.eq.s32.totalorder %s27, 1
      %p50 = por %p48, %p49
      %p52 = scmp.ne.s32.totalorder %s35, %s51
      %p53 = scmp.eq.s32.totalorder %s27, 0
      %p54 = por %p52, %p53
      %s56 = sadd.s32 %s55, 1
      %p59 = scmp.eq.s32.totalorder %s21, 1
      %p60 = scmp.ne.s32.totalorder %s55, %s57
      %p61 = scmp.eq.s32.totalorder %s21, 0
      %p62 = por %p60, %p61
      %p63 = scmp.ne.s32.totalorder %s55, %s57
      %p64 = scmp.eq.s32.totalorder %s26, 1
      %p65 = por %p63, %p64
      %p66 = scmp.ne.s32.totalorder %s57, %s58
      %p67 = scmp.eq.s32.totalorder %s26, 0
      %p68 = por %p66, %p67
      %p69 = scmp.ne.s32.totalorder %s57, %s58
      %p70 = scmp.eq.s32.totalorder %s27, 1
      %p71 = por %p69, %p70
      %p73 = scmp.ne.s32.totalorder %s58, %s72
      %p74 = scmp.eq.s32.totalorder %s27, 0
      %p75 = por %p73, %p74
      %s77 = sadd.s32 %s76, 1
      %p80 = scmp.eq.s32.totalorder %s21, 1
      %p81 = scmp.ne.s32.totalorder %s76, %s78
      %p82 = scmp.eq.s32.totalorder %s21, 0
      %p83 = por %p81, %p82
      %p84 = scmp.ne.s32.totalorder %s76, %s78
      %p85 = scmp.eq.s32.totalorder %s26, 1
      %p86 = por %p84, %p85
      %p87 = scmp.ne.s32.totalorder %s78, %s79
      %p88 = scmp.eq.s32.totalorder %s26, 0
      %p89 = por %p87, %p88
      %p90 = scmp.ne.s32.totalorder %s78, %s79
      %p91 = scmp.eq.s32.totalorder %s27, 1
      %p92 = por %p90, %p91
      %p94 = scmp.ne.s32.totalorder %s79, %s93
      %p95 = scmp.eq.s32.totalorder %s27, 0
      %p96 = por %p94, %p95
      %s98 = sadd.s32 %s97, 1
      %p101 = scmp.eq.s32.totalorder %s21, 1
      %p102 = scmp.ne.s32.totalorder %s97, %s99
      %p103 = scmp.eq.s32.totalorder %s21, 0
      %p104 = por %p102, %p103
      %p105 = scmp.ne.s32.totalorder %s97, %s99
      %p106 = scmp.eq.s32.totalorder %s26, 1
      %p107 = por %p105, %p106
      %p108 = scmp.ne.s32.totalorder %s99, %s100
      %p109 = scmp.eq.s32.totalorder %s26, 0
      %p110 = por %p108, %p109
      %p111 = scmp.ne.s32.totalorder %s99, %s100
      %p112 = scmp.eq.s32.totalorder %s27, 1
      %p113 = por %p111, %p112
      %p115 = scmp.ne.s32.totalorder %s100, %s114
      %p116 = scmp.eq.s32.totalorder %s27, 0
      %p117 = por %p115, %p116
      %s119 = sadd.s32 %s118, 1
      %p122 = scmp.eq.s32.totalorder %s21, 1
      %p123 = scmp.ne.s32.totalorder %s118, %s120
      %p124 = scmp.eq.s32.totalorder %s21, 0
      %p125 = por %p123, %p124
      %p126 = scmp.ne.s32.totalorder %s118, %s120
      %p127 = scmp.eq.s32.totalorder %s26, 1
      %p128 = por %p126, %p127
      %p129 = scmp.ne.s32.totalorder %s120, %s121
      %p130 = scmp.eq.s32.totalorder %s26, 0
      %p131 = por %p129, %p130
      %p132 = scmp.ne.s32.totalorder %s120, %s121
      %p133 = scmp.eq.s32.totalorder %s27, 1
      %p134 = por %p132, %p133
      %p136 = scmp.ne.s32.totalorder %s121, %s135
      %p137 = scmp.eq.s32.totalorder %s27, 0
      %p138 = por %p136, %p137
      %s140 = sadd.s32 %s139, 1
      %p143 = scmp.eq.s32.totalorder %s21, 1
      %p144 = scmp.ne.s32.totalorder %s139, %s141
      %p145 = scmp.eq.s32.totalorder %s21, 0
      %p146 = por %p144, %p145
      %p147 = scmp.ne.s32.totalorder %s139, %s141
      %p148 = scmp.eq.s32.totalorder %s26, 1
      %p149 = por %p147, %p148
      %p150 = scmp.ne.s32.totalorder %s141, %s142
      %p151 = scmp.eq.s32.totalorder %s26, 0
      %p152 = por %p150, %p151
      %p153 = scmp.ne.s32.totalorder %s141, %s142
      %p154 = scmp.eq.s32.totalorder %s27, 1
      %p155 = por %p153, %p154
      %p157 = scmp.ne.s32.totalorder %s142, %s156
      %p158 = scmp.eq.s32.totalorder %s27, 0
      %p159 = por %p157, %p158
      %s161 = sadd.s32 %s160, 1
      %p164 = scmp.eq.s32.totalorder %s21, 1
      %p165 = scmp.ne.s32.totalorder %s160, %s162
      %p166 = scmp.eq.s32.totalorder %s21, 0
      %p167 = por %p165, %p166
      %p168 = scmp.ne.s32.totalorder %s160, %s162
      %p169 = scmp.eq.s32.totalorder %s26, 1
      %p170 = por %p168, %p169
      %p171 = scmp.ne.s32.totalorder %s162, %s163
      %p172 = scmp.eq.s32.totalorder %s26, 0
      %p173 = por %p171, %p172
      %p174 = scmp.ne.s32.totalorder %s162, %s163
      %p175 = scmp.eq.s32.totalorder %s27, 1
      %p176 = por %p174, %p175
      %p178 = scmp.ne.s32.totalorder %s163, %s177
      %p179 = scmp.eq.s32.totalorder %s27, 0
      %p180 = por %p178, %p179
      %s181 = ssub.s32 %s21, %s28
      %p182 = scmp.eq.s32.totalorder %s181, 0
      %s184 = sadd.s32 %s183, 1
      %s185 = scalar_select %p182, %s183, %s184
      %p188 = pneg %p182
      %p189 = scmp.eq.s32.totalorder %s21, 1
      %p190 = por %p188, %p189
      %p191 = scmp.ne.s32.totalorder %s183, %s186
      %p192 = scmp.eq.s32.totalorder %s21, 0
      %p193 = por %p191, %p192
      %p194 = scmp.ne.s32.totalorder %s183, %s186
      %p195 = scmp.eq.s32.totalorder %s26, 1
      %p196 = por %p194, %p195
      %p197 = scmp.ne.s32.totalorder %s186, %s187
      %p198 = scmp.eq.s32.totalorder %s26, 0
      %p199 = por %p197, %p198
      %p200 = scmp.ne.s32.totalorder %s186, %s187
      %p201 = scmp.eq.s32.totalorder %s27, 1
      %p202 = por %p200, %p201
      %p204 = scmp.ne.s32.totalorder %s187, %s203
      %p205 = scmp.eq.s32.totalorder %s27, 0
      %p206 = por %p204, %p205
      %p207 = scmp.le.s32.totalorder 1, %s21
      %p208 = scmp.lt.s32.totalorder %s21, 3
      %p209 = pnand %p207, %p208
      %p210 = pneg %p209
      // Predicated region
      $region9: #{tpu_custom_call.1} parent=5 // pred_check
        _
      $region10: #{tpu_custom_call.1} parent=5 // pred_check_branch
        %212 = sbr.rel (%p209) target = $region12
      $region11: #{tpu_custom_call.1} parent=5 // pred_region
        %s213 = ssub.s32 %s21, 1
        // Predicated region
        $region13: #{tpu_custom_call.1} parent=11 // pred_check
          %p214 = pneg %p68
        $region14: #{tpu_custom_call.1} parent=11 // pred_check_branch
          %216 = sbr.rel (%p214) target = $region16
        $region15: #{tpu_custom_call.1} parent=11 // pred_region
          %218 = vsyncadd [#allocation6], 0
          %s220 = sshll.u32 %s1, 4
          %s221 = int_to_ptr.hbm [resolvable:$true] %s220
          %s222 = sshll.u32 [#allocation5], 4
          %s223 = int_to_ptr.vmem [resolvable:$true] %s222
          %225 = dma.hbm_to_vmem [thread:$0]  %s221, 16, %s223, [#allocation6]
        $region16: #{tpu_custom_call.1} parent=11 // pred_fallthru
          _
        // Predicated region
        $region17: #{tpu_custom_call.1} parent=11 // pred_check
          %p226 = pneg %p89
        $region18: #{tpu_custom_call.1} parent=11 // pred_check_branch
          %228 = sbr.rel (%p226) target = $region20
        $region19: #{tpu_custom_call.1} parent=11 // pred_region
          _
        $region20: #{tpu_custom_call.1} parent=11 // pred_fallthru
          _
        // Predicated region
        $region21: #{tpu_custom_call.1} parent=11 // pred_check
          %p229 = pneg %p110
        $region22: #{tpu_custom_call.1} parent=11 // pred_check_branch
          %231 = sbr.rel (%p229) target = $region24
        $region23: #{tpu_custom_call.1} parent=11 // pred_region
          %233 = vsyncadd [#allocation6], 0
          %s234 = sshll.u32 %s3, 4
          %s235 = int_to_ptr.hbm [resolvable:$true] %s234
          %s236 = sshll.u32 [#allocation7], 4
          %s237 = int_to_ptr.vmem [resolvable:$true] %s236
          %242 = dma.hbm_to_vmem [thread:$0]  %s235, 1024, %s237, [#allocation6], 64, 64, 4
        $region24: #{tpu_custom_call.1} parent=11 // pred_fallthru
          _
        // Predicated region
        $region25: #{tpu_custom_call.1} parent=11 // pred_check
          %p243 = pneg %p131
        $region26: #{tpu_custom_call.1} parent=11 // pred_check_branch
          %245 = sbr.rel (%p243) target = $region28
        $region27: #{tpu_custom_call.1} parent=11 // pred_region
          _
        $region28: #{tpu_custom_call.1} parent=11 // pred_fallthru
          _
        // Predicated region
        $region29: #{tpu_custom_call.1} parent=11 // pred_check
          %p246 = pneg %p152
        $region30: #{tpu_custom_call.1} parent=11 // pred_check_branch
          %248 = sbr.rel (%p246) target = $region32
        $region31: #{tpu_custom_call.1} parent=11 // pred_region
          %250 = vsyncadd [#allocation9], 0
          %s251 = sshll.u32 %s5, 4
          %s252 = int_to_ptr.hbm [resolvable:$true] %s251
          %s253 = sshll.u32 [#allocation8], 4
          %s254 = int_to_ptr.vmem [resolvable:$true] %s253
          %259 = dma.hbm_to_vmem [thread:$0]  %s252, 1024, %s254, [#allocation9], 64, 64, 4
        $region32: #{tpu_custom_call.1} parent=11 // pred_fallthru
          _
        // Predicated region
        $region33: #{tpu_custom_call.1} parent=11 // pred_check
          %p260 = pneg %p173
        $region34: #{tpu_custom_call.1} parent=11 // pred_check_branch
          %262 = sbr.rel (%p260) target = $region36
        $region35: #{tpu_custom_call.1} parent=11 // pred_region
          _
        $region36: #{tpu_custom_call.1} parent=11 // pred_fallthru
          _
      $region12: #{tpu_custom_call.1} parent=5 // pred_fallthru
        _
      %p263 = scmp.lt.s32.totalorder %s21, 2
      // Predicated region
      $region37: #{tpu_custom_call.1} parent=5 // pred_check
        %p264 = pneg %p263
      $region38: #{tpu_custom_call.1} parent=5 // pred_check_branch
        %266 = sbr.rel (%p264) target = $region40
      $region39: #{tpu_custom_call.1} parent=5 // pred_region
        // Predicated region
        $region41: #{tpu_custom_call.1} parent=39 // pred_check
          %p267 = pneg %p41
        $region42: #{tpu_custom_call.1} parent=39 // pred_check_branch
          %269 = sbr.rel (%p267) target = $region44
        $region43: #{tpu_custom_call.1} parent=39 // pred_region
          %s270 = sand.u32 %s31, 1
          %s271 = scalar_lea.sflag [#allocation3], %s270
          %s272 = sand.u32 %s31, 1
          %s273 = smul.addr %s272, 8
          %s274 = scalar_lea.vmem [#allocation2], %s273
          %276 = vsyncadd %s271, 0
          %s277 = smul.addr %s21, 8
          %s278 = scalar_lea.hbm %s0, %s277
          %s280 = sshll.u32 %s278, 4
          %s281 = int_to_ptr.hbm [resolvable:$true] %s280
          %s282 = sshll.u32 %s274, 4
          %s283 = int_to_ptr.vmem [resolvable:$true] %s282
          %285 = dma.hbm_to_vmem [thread:$0]  %s281, 128, %s283, %s271
        $region44: #{tpu_custom_call.1} parent=39 // pred_fallthru
          _
      $region40: #{tpu_custom_call.1} parent=5 // pred_fallthru
        _
      %p286 = scmp.le.s32.totalorder 1, %s21
      %p287 = scmp.lt.s32.totalorder %s21, 3
      %p288 = pnand %p286, %p287
      %p289 = pneg %p288
      // Predicated region
      $region45: #{tpu_custom_call.1} parent=5 // pred_check
        _
      $region46: #{tpu_custom_call.1} parent=5 // pred_check_branch
        %291 = sbr.rel (%p288) target = $region48
      $region47: #{tpu_custom_call.1} parent=5 // pred_region
        %s292 = ssub.s32 %s21, 1
        %s293 = sand.u32 %s34, 1
        %s294 = scalar_lea.sflag [#allocation3], %s293
        %s295 = sand.u32 %s34, 1
        %s296 = smul.addr %s295, 8
        %s297 = scalar_lea.vmem [#allocation2], %s296
        // Predicated region
        $region49: #{tpu_custom_call.1} parent=47 // pred_check
          %p298 = pneg %p47
        $region50: #{tpu_custom_call.1} parent=47 // pred_check_branch
          %300 = sbr.rel (%p298) target = $region52
        $region51: #{tpu_custom_call.1} parent=47 // pred_region
          %302 = dma.done %s294, 128
        $region52: #{tpu_custom_call.1} parent=47 // pred_fallthru
          _
        // Predicated region
        $region53: #{tpu_custom_call.1} parent=47 // pred_check
          %p303 = pneg %p68
        $region54: #{tpu_custom_call.1} parent=47 // pred_check_branch
          %305 = sbr.rel (%p303) target = $region56
        $region55: #{tpu_custom_call.1} parent=47 // pred_region
          %307 = dma.done [#allocation6], 16
        $region56: #{tpu_custom_call.1} parent=47 // pred_fallthru
          _
        // Predicated region
        $region57: #{tpu_custom_call.1} parent=47 // pred_check
          %p308 = pneg %p110
        $region58: #{tpu_custom_call.1} parent=47 // pred_check_branch
          %310 = sbr.rel (%p308) target = $region60
        $region59: #{tpu_custom_call.1} parent=47 // pred_region
          %312 = dma.done [#allocation6], 1024
        $region60: #{tpu_custom_call.1} parent=47 // pred_fallthru
          _
        // Predicated region
        $region61: #{tpu_custom_call.1} parent=47 // pred_check
          %p313 = pneg %p152
        $region62: #{tpu_custom_call.1} parent=47 // pred_check_branch
          %315 = sbr.rel (%p313) target = $region64
        $region63: #{tpu_custom_call.1} parent=47 // pred_region
          %317 = dma.done [#allocation9], 1024
        $region64: #{tpu_custom_call.1} parent=47 // pred_fallthru
          _
        %s318 = sand.u32 %s34, 1
        %s319 = scalar_lea.sflag [#allocation3], %s318
        %s320 = sand.u32 %s34, 1
        %s321 = smul.addr %s320, 8
        %s322 = scalar_lea.vmem [#allocation2], %s321
        %p323 = pneg %p47
        %p324 = pneg %p44
        %p325 = pneg %p68
        %p326 = pneg %p65
        %p327 = pneg %p89
        %p328 = pneg %p86
        %p329 = pneg %p110
        %p330 = pneg %p107
        %p331 = pneg %p131
        %p332 = pneg %p128
        %p333 = pneg %p152
        %p334 = pneg %p149
        %p335 = pneg %p173
        %p336 = pneg %p170
        %p337 = pneg %p199
        %p338 = pneg %p196
        %s339 = sand.u32 %s186, 1
        %s340 = scalar_lea.sflag [#allocation4], %s339
        %s341 = sand.u32 %s186, 1
        %s342 = smul.addr %s341, 8
        %s343 = scalar_lea.vmem [#allocation10], %s342
        %v344 = vld [vmem:[%s297] sm:$0xff]
        %v345 = vld [vmem:[#allocation5] sm:$0x1]
        %v346 = vld [vmem:[%s2] sm:$0x1]
        %347 = vadd.xlane.f32.xlu0 %v344
        %v348 = vpop.xlane.xlu0 %347
        %v349 = vmul.f32 %v348, 0.03125
        %v350 = vsub.f32 %v344, %v349
        %v351 = vlaneseq
        %v352 = vand.u32 %v351, 127
        %vm353 = vcmp.lt.s32.totalorder %v352, 32
        %v354 = vsel %vm353, 1, 0
        %vm355 = vcmp.eq.s32.totalorder %v354, 1
        %v356 = vsel %vm355, %v350, 0.0
        %v357 = vmul.f32 %v356, %v356
        %358 = vadd.xlane.f32.xlu0 %v357
        %v359 = vpop.xlane.xlu0 %358
        %v360 = vmul.f32 %v359, 0.03125
        %v361 = vadd.f32 %v360, 1e-05
        %v362 = vrsqrt.pop %v361
        %v363 = vmul.f32 %v362, %v361
        %v364 = vmul.f32 %v363, %v362
        %v365 = vmul.f32 0.5, %v364
        %v366 = vsub.f32 1.5, %v365
        %v367 = vmul.f32 %v362, %v366
        %vm368 = vweird.f32 %v361
        %vm369 = vweird.f32 %v362
        %vm370 = vmor %vm368, %vm369
        %v371 = vsel %vm370, %v362, %v367
        %v372 = vmul.f32 %v356, %v371
        %v374 = vperm.slane %v345, 0
        %v376 = vmul.f32 %v372, %v374
        %v378 = vperm.slane %v346, 0
        %v380 = vadd.f32 %v376, %v378
        %v381 = vpack.c.bf16 %v380, %v380
        %v382 = vld [vmem:[#allocation7] sm:$0xf]
        %v383 = vld [vmem:[#allocation7 + $0x4] sm:$0xf]
        %v384 = vld [vmem:[#allocation7 + $0x8] sm:$0xf]
        %v385 = vld [vmem:[#allocation7 + $0xc] sm:$0xf]
        %v386 = vld [vmem:[#allocation7 + $0x10] sm:$0xf]
        %v387 = vld [vmem:[#allocation7 + $0x14] sm:$0xf]
        %v388 = vld [vmem:[#allocation7 + $0x18] sm:$0xf]
        %v389 = vld [vmem:[#allocation7 + $0x1c] sm:$0xf]
        %v390 = vld [vmem:[#allocation7 + $0x20] sm:$0xf]
        %v391 = vld [vmem:[#allocation7 + $0x24] sm:$0xf]
        %v392 = vld [vmem:[#allocation7 + $0x28] sm:$0xf]
        %v393 = vld [vmem:[#allocation7 + $0x2c] sm:$0xf]
        %v394 = vld [vmem:[#allocation7 + $0x30] sm:$0xf]
        %v395 = vld [vmem:[#allocation7 + $0x34] sm:$0xf]
        %v396 = vld [vmem:[#allocation7 + $0x38] sm:$0xf]
        %v397 = vld [vmem:[#allocation7 + $0x3c] sm:$0xf]
        %v398 = vld [vmem:[%s4] sm:$0x1]
        %v400 = vperm.slane %v398, 0
        %v418 = vunpack.c.l.b16 %v382
        %v419 = vunpack.c.l.b16 %v383
        %v420 = vunpack.c.l.b16 %v384
        %v421 = vunpack.c.l.b16 %v385
        %v422 = vunpack.c.l.b16 %v386
        %v423 = vunpack.c.l.b16 %v387
        %v424 = vunpack.c.l.b16 %v388
        %v425 = vunpack.c.l.b16 %v389
        %v426 = vunpack.c.l.b16 %v390
        %v427 = vunpack.c.l.b16 %v391
        %v428 = vunpack.c.l.b16 %v392
        %v429 = vunpack.c.l.b16 %v393
        %v430 = vunpack.c.l.b16 %v394
        %v431 = vunpack.c.l.b16 %v395
        %v432 = vunpack.c.l.b16 %v396
        %v433 = vunpack.c.l.b16 %v397
        %v434 = vpack.c.b16 %v419, %v418
        %v435 = vpack.c.b16 %v421, %v420
        %v436 = vpack.c.b16 %v423, %v422
        %v437 = vpack.c.b16 %v425, %v424
        %v438 = vpack.c.b16 %v427, %v426
        %v439 = vpack.c.b16 %v429, %v428
        %v440 = vpack.c.b16 %v431, %v430
        %v441 = vpack.c.b16 %v433, %v432
        %450 = vmatpush.bf16.msra.mxu0 %v441
        %451 = vmatpush.bf16.msra.mxu0 %v440
        %452 = vmatpush.bf16.msra.mxu0 %v439
        %453 = vmatpush.bf16.msra.mxu0 %v438
        %454 = vmatpush.bf16.msra.mxu0 %v437
        %455 = vmatpush.bf16.msra.mxu0 %v436
        %456 = vmatpush.bf16.msra.mxu0 %v435
        %457 = vmatpush.bf16.msra.mxu0 %v434
        %458 = vmatmul.bf16.gmra.mxu0 %v381
        %v459 = vpop.f32.mrf.mxu0
        %v460 = vadd.f32 %v400, %v459
        %v461 = vpop.f32.mrf.mxu0
        %462 = vdwg.mxu0
        %v463 = vmax.f32 %v460, 0.0
        %v464 = vpack.c.bf16 %v463, %v463
        %v465 = vld [vmem:[#allocation8] sm:$0xf]
        %v466 = vld [vmem:[#allocation8 + $0x4] sm:$0xf]
        %v467 = vld [vmem:[#allocation8 + $0x8] sm:$0xf]
        %v468 = vld [vmem:[#allocation8 + $0xc] sm:$0xf]
        %v469 = vld [vmem:[#allocation8 + $0x10] sm:$0xf]
        %v470 = vld [vmem:[#allocation8 + $0x14] sm:$0xf]
        %v471 = vld [vmem:[#allocation8 + $0x18] sm:$0xf]
        %v472 = vld [vmem:[#allocation8 + $0x1c] sm:$0xf]
        %v473 = vld [vmem:[#allocation8 + $0x20] sm:$0xf]
        %v474 = vld [vmem:[#allocation8 + $0x24] sm:$0xf]
        %v475 = vld [vmem:[#allocation8 + $0x28] sm:$0xf]
        %v476 = vld [vmem:[#allocation8 + $0x2c] sm:$0xf]
        %v477 = vld [vmem:[#allocation8 + $0x30] sm:$0xf]
        %v478 = vld [vmem:[#allocation8 + $0x34] sm:$0xf]
        %v479 = vld [vmem:[#allocation8 + $0x38] sm:$0xf]
        %v480 = vld [vmem:[#allocation8 + $0x3c] sm:$0xf]
        %v497 = vunpack.c.l.b16 %v465
        %v498 = vunpack.c.l.b16 %v466
        %v499 = vunpack.c.l.b16 %v467
        %v500 = vunpack.c.l.b16 %v468
        %v501 = vunpack.c.l.b16 %v469
        %v502 = vunpack.c.l.b16 %v470
        %v503 = vunpack.c.l.b16 %v471
        %v504 = vunpack.c.l.b16 %v472
        %v505 = vunpack.c.l.b16 %v473
        %v506 = vunpack.c.l.b16 %v474
        %v507 = vunpack.c.l.b16 %v475
        %v508 = vunpack.c.l.b16 %v476
        %v509 = vunpack.c.l.b16 %v477
        %v510 = vunpack.c.l.b16 %v478
        %v511 = vunpack.c.l.b16 %v479
        %v512 = vunpack.c.l.b16 %v480
        %v513 = vpack.c.b16 %v498, %v497
        %v514 = vpack.c.b16 %v500, %v499
        %v515 = vpack.c.b16 %v502, %v501
        %v516 = vpack.c.b16 %v504, %v503
        %v517 = vpack.c.b16 %v506, %v505
        %v518 = vpack.c.b16 %v508, %v507
        %v519 = vpack.c.b16 %v510, %v509
        %v520 = vpack.c.b16 %v512, %v511
        %529 = vmatpush.bf16.msra.mxu0 %v520
        %530 = vmatpush.bf16.msra.mxu0 %v519
        %531 = vmatpush.bf16.msra.mxu0 %v518
        %532 = vmatpush.bf16.msra.mxu0 %v517
        %533 = vmatpush.bf16.msra.mxu0 %v516
        %534 = vmatpush.bf16.msra.mxu0 %v515
        %535 = vmatpush.bf16.msra.mxu0 %v514
        %536 = vmatpush.bf16.msra.mxu0 %v513
        %537 = vmatmul.bf16.gmra.mxu0 %v464
        %v538 = vpop.f32.mrf.mxu0
        %v539 = vadd.f32 0.0, %v538
        %v540 = vpop.f32.mrf.mxu0
        %541 = vdwg.mxu0
        %v542 = vadd.f32 %v344, %v539
        %v543 = vld [vmem:[%s6] sm:$0x1]
        %v545 = vperm.slane %v543, 0
        %v547 = vadd.f32 %v542, %v545
        %548 = vst [vmem:[%s343] sm:$0xff] %v547
        %s549 = sand.u32 %s186, 1
        %s550 = scalar_lea.sflag [#allocation4], %s549
        %s551 = sand.u32 %s186, 1
        %s552 = smul.addr %s551, 8
        %s553 = scalar_lea.vmem [#allocation10], %s552
        // Predicated region
        $region65: #{tpu_custom_call.1} parent=47 // pred_check
          %p554 = pneg %p196
        $region66: #{tpu_custom_call.1} parent=47 // pred_check_branch
          %556 = sbr.rel (%p554) target = $region68
        $region67: #{tpu_custom_call.1} parent=47 // pred_region
          %558 = vsyncadd %s550, 0
          %s559 = smul.addr %s26, 8
          %s560 = scalar_lea.hbm %s7, %s559
          %s562 = sshll.u32 %s553, 4
          %s563 = int_to_ptr.vmem [resolvable:$true] %s562
          %s564 = sshll.u32 %s560, 4
          %s565 = int_to_ptr.hbm [resolvable:$true] %s564
          %567 = dma.vmem_to_hbm [thread:$0]  %s563, 128, %s565, %s550
        $region68: #{tpu_custom_call.1} parent=47 // pred_fallthru
          _
      $region48: #{tpu_custom_call.1} parent=5 // pred_fallthru
        _
      %p568 = scmp.le.s32.totalorder 2, %s21
      // Predicated region
      $region69: #{tpu_custom_call.1} parent=5 // pred_check
        %p569 = pneg %p568
      $region70: #{tpu_custom_call.1} parent=5 // pred_check_branch
        %571 = sbr.rel (%p569) target = $region72
      $region71: #{tpu_custom_call.1} parent=5 // pred_region
        %s572 = ssub.s32 %s21, 2
        // Predicated region
        $region73: #{tpu_custom_call.1} parent=71 // pred_check
          %p573 = pneg %p202
        $region74: #{tpu_custom_call.1} parent=71 // pred_check_branch
          %575 = sbr.rel (%p573) target = $region76
        $region75: #{tpu_custom_call.1} parent=71 // pred_region
          %s576 = sand.u32 %s187, 1
          %s577 = scalar_lea.sflag [#allocation4], %s576
          %s578 = sand.u32 %s187, 1
          %s579 = smul.addr %s578, 8
          %s580 = scalar_lea.vmem [#allocation10], %s579
          %582 = dma.done %s577, 128
        $region76: #{tpu_custom_call.1} parent=71 // pred_fallthru
          _
      $region72: #{tpu_custom_call.1} parent=5 // pred_fallthru
        _
    $region6: #{tpu_custom_call.1} parent=1 // loop_footer
      %s25 = sadd.s32 1, %s21
    $region7: #{tpu_custom_call.1} parent=1 // loop_footer_branch
      %20 = sbr.rel target = $region3
    $region8: #{tpu_custom_call.1} parent=1 // loop_exit
      _
    %583 = vsyncpa [#allocation3], 1
    %s584 = scalar_lea.sflag [#allocation3], 1
    %585 = vsyncpa %s584, 1
    %586 = vsyncpa [#allocation6], 1
    %587 = vsyncpa [#allocation9], 1
    %588 = vsyncpa [#allocation4], 1
    %s589 = scalar_lea.sflag [#allocation4], 1
    %590 = vsyncpa %s589, 1

</llo_original>
